<compile_context>
chip_gen: v6e
topology: v6e:2x2x1
jax: 0.10.0
libtpu: 0.0.40
codegen_flags: <defaults>
</compile_context>

<pallas_src>
from functools import partial
from math import sqrt

import jax
import jax.numpy as jnp
from jax.experimental import pallas as pl
from jax.experimental.pallas import tpu as pltpu


# ----------------------------- in-kernel helpers -----------------------------

def _layernorm_f32(x, gamma, beta, eps=1e-5):
    # Matches the custom LayerNorm: var = E[x^2] - E[x]^2 + eps (eps inside sqrt).
    mu = jnp.mean(x, axis=-1, keepdims=True)
    mu2 = jnp.mean(x * x, axis=-1, keepdims=True)
    var = mu2 - mu * mu + eps
    return gamma * ((x - mu) * jax.lax.rsqrt(var)) + beta


def _gelu(x):
    # exact erf-based GELU, as in the reference module
    return x * 0.5 * (1.0 + jax.lax.erf(x / sqrt(2.0)))


# --------------------------------- kernel ------------------------------------

def layer_kernel(nh,
                 x_ref, m_ref,
                 g1_ref, b1_ref,
                 wqkv_ref, bqkv_ref,
                 wo_ref, bo_ref,
                 g2_ref, b2_ref,
                 w1_ref, bb1_ref, w2_ref, bb2_ref,
                 o_ref):
    l = x_ref.shape[1]
    d = x_ref.shape[2]
    h = d // nh
    cdt = wqkv_ref.dtype          # MXU operand dtype (== model/weight dtype)
    f32 = jnp.float32

    x = x_ref[0].astype(f32)      # (l, d): LN stats & residuals in f32
    m = m_ref[...].astype(f32)    # (l, l): mask, pre-scaled by 1/sqrt(d) in wrapper

    # --- attention branch ---
    ln1 = _layernorm_f32(x, g1_ref[...].astype(f32), b1_ref[...].astype(f32))

    # Fused QKV projection: single lane-dense matmul, f32 accumulation.
    # 1/sqrt(d) is already folded into the q-third of wqkv/bqkv.
    qkv = jnp.dot(ln1.astype(cdt), wqkv_ref[...],
                  preferred_element_type=f32) + bqkv_ref[...].astype(f32)   # (l, 3d)

    heads = []
    for n in range(nh):           # static unroll; one (l, l) score tile at a time
        qn = qkv[:, n * h:(n + 1) * h].astype(cdt)                          # (l, h)
        kn = qkv[:, d + n * h:d + (n + 1) * h].astype(cdt)                  # (l, h)
        vn = qkv[:, 2 * d + n * h:2 * d + (n + 1) * h].astype(cdt)          # (l, h)

        # scores: q.k^T with the (pre-scaled) mask added -> equivalent to the
        # reference's (q.k + m)/sqrt(d) since 1/sqrt(d) is folded into q and m.
        s = jax.lax.dot_general(qn, kn, (((1,), (1,)), ((), ())),
                                preferred_element_type=f32) + m             # (l, l)
        s = s - jnp.max(s, axis=-1, keepdims=True)
        e = jnp.exp(s)
        denom = jnp.sum(e, axis=-1, keepdims=True)                          # (l, 1)
        # TODO(synk): guard denom==0 if this kernel is reused with arbitrary
        # (possibly fully-masked) padding masks; impossible for causal masks.

        pv = jnp.dot(e.astype(cdt), vn, preferred_element_type=f32)         # (l, h)
        heads.append(pv * pl.reciprocal(denom, approx=True))                # EUP recip

    # Single relayout (lane concat), then one K=d output projection on the MXU.
    mha = jnp.concatenate(heads, axis=-1).astype(cdt)                       # (l, d)
    x1 = x + jnp.dot(mha, wo_ref[...],
                     preferred_element_type=f32) + bo_ref[...].astype(f32)  # (l, d)

    # --- FFN branch ---
    ln2 = _layernorm_f32(x1, g2_ref[...].astype(f32), b2_ref[...].astype(f32))
    f = jnp.dot(ln2.astype(cdt), w1_ref[...],
                preferred_element_type=f32) + bb1_ref[...].astype(f32)       # (l, 4d)
    f = _gelu(f)
    f = jnp.dot(f.astype(cdt), w2_ref[...],
                preferred_element_type=f32) + bb2_ref[...].astype(f32)       # (l, d)

    o_ref[0] = (x1 + f).astype(o_ref.dtype)


# -------------------------------- wrapper ------------------------------------

def layer_forward(x, m, params):
    b, l, d = x.shape
    nh = params["nh"]
    assert d % nh == 0, "number of heads should divide embedding dim"
    scale = 1.0 / sqrt(d)
    dt = x.dtype

    wx, bx = params["wx"], params["bx"]            # (d, 3d), (1, 3d)

    # Fold 1/sqrt(d) into the q-third of the fused QKV weight/bias and the mask
    # (zero kernel cost).  Weights are cast to the activation dtype so bf16
    # models feed the MXU bf16 operands; biases/mask stay f32.
    wqkv = jnp.concatenate([wx[:, :d] * scale, wx[:, d:]], axis=1).astype(dt)
    bqkv = jnp.concatenate([bx[:, :d] * scale, bx[:, d:]], axis=1).astype(jnp.float32)
    wo = params["wo"].astype(dt)
    w1 = params["w1"].astype(dt)
    w2 = params["w2"].astype(dt)
    m_scaled = (m * scale).astype(jnp.float32)

    def full(shape):
        nd = len(shape)
        return pl.BlockSpec(shape, lambda i, _nd=nd: (0,) * _nd)

    # Scoped-VMEM budget: resident weights (double-buffered by the pipeline),
    # I/O blocks + mask, and the f32 intermediates; capped per generation at
    # 75% of physical VMEM (≈48 MiB on v7x, ≈96 MiB on v5e/v6e).
    isz = jnp.dtype(dt).itemsize
    weight_bytes = 2 * (12 * d * d + 10 * d) * isz
    io_bytes = 2 * (2 * l * d) * isz + 2 * l * l * 4
    interm_bytes = 4 * (15 * l * d + 3 * l * l + 8 * l * d)
    need = weight_bytes + io_bytes + interm_bytes + (4 << 20)
    try:
        cap = int(0.75 * pltpu.get_tpu_info().vmem_capacity_bytes)
    except Exception:
        cap = 48 * 2 ** 20
    vmem_limit = int(min(max(need, 32 * 2 ** 20), cap))

    out = pl.pallas_call(
        partial(layer_kernel, nh),
        out_shape=jax.ShapeDtypeStruct((b, l, d), dt),
        grid=(b,),
        in_specs=[
            pl.BlockSpec((1, l, d), lambda i: (i, 0, 0)),   # x
            full((l, l)),                                   # mask (pre-scaled)
            full((1, d)), full((1, d)),                     # ln1 gamma, beta
            full((d, 3 * d)), full((1, 3 * d)),             # fused wqkv, bqkv
            full((d, d)), full((1, d)),                     # wo, bo
            full((1, d)), full((1, d)),                     # ln2 gamma, beta
            full((d, 4 * d)), full((1, 4 * d)),             # ffn w1, b1
            full((4 * d, d)), full((1, d)),                 # ffn w2, b2
        ],
        out_specs=pl.BlockSpec((1, l, d), lambda i: (i, 0, 0)),
        compiler_params=pltpu.CompilerParams(
            dimension_semantics=("parallel",),
            vmem_limit_bytes=vmem_limit),
    )(x, m_scaled,
      params["g1"], params["b1"],
      wqkv, bqkv,
      wo, params["bo"],
      params["g2"], params["b2"],
      w1, params["bb1"], w2, params["bb2"])
    return out, m


# ------------------------- pure-JAX reference (check) -------------------------

def layer_ref(x, m, p):
    def ln(z, g, bta):
        mu = z.mean(-1, keepdims=True)
        mu2 = (z * z).mean(-1, keepdims=True)
        var = mu2 - mu * mu + 1e-5
        return g * ((z - mu) / jnp.sqrt(var)) + bta

    b_, l, d = x.shape
    nh = p["nh"]
    h = d // nh
    ln1 = ln(x, p["g1"], p["b1"])
    qkv = ln1 @ p["wx"] + p["bx"]
    q = qkv[..., :d].reshape(b_, l, nh, h).transpose(0, 2, 1, 3)
    k = qkv[..., d:2 * d].reshape(b_, l, nh, h).transpose(0, 2, 1, 3)
    v = qkv[..., 2 * d:].reshape(b_, l, nh, h).transpose(0, 2, 1, 3)
    s = (jnp.einsum("bnic,bnjc->bnij", q, k) + m) / sqrt(d)
    A = jax.nn.softmax(s, axis=-1)
    o = jnp.einsum("bnij,bnjc->bnic", A, v)
    mha = o.transpose(0, 2, 1, 3).reshape(b_, l, d)
    x1 = x + mha @ p["wo"] + p["bo"]
    f = ln(x1, p["g2"], p["b2"]) @ p["w1"] + p["bb1"]
    f = f * 0.5 * (1.0 + jax.lax.erf(f / sqrt(2.0)))
    f = f @ p["w2"] + p["bb2"]
    return x1 + f


# ---------------------------------- main --------------------------------------

if __name__ == "__main__":
    b, l, d, nh = 2, 8, 32, 4

    key = jax.random.PRNGKey(0)
    ks = jax.random.split(key, 6)
    f32 = jnp.float32

    # deterministic synthetic init, mirroring the module's __init__:
    #   Linear: weight ~ N(0, 0.02), bias = 0 ; LayerNorm: gamma = 1, beta = 0
    params = dict(
        nh=nh,
        g1=jnp.ones((1, d), f32), b1=jnp.zeros((1, d), f32),
        wx=0.02 * jax.random.normal(ks[0], (d, 3 * d), f32), bx=jnp.zeros((1, 3 * d), f32),
        wo=0.02 * jax.random.normal(ks[1], (d, d), f32), bo=jnp.zeros((1, d), f32),
        g2=jnp.ones((1, d), f32), b2=jnp.zeros((1, d), f32),
        w1=0.02 * jax.random.normal(ks[2], (d, 4 * d), f32), bb1=jnp.zeros((1, 4 * d), f32),
        w2=0.02 * jax.random.normal(ks[3], (4 * d, d), f32), bb2=jnp.zeros((1, d), f32),
    )

    x = jax.random.normal(ks[4], (b, l, d), f32)
    # causal additive mask (0 on/below diagonal, -1e9 above), broadcast over b & heads
    mask = jnp.where(jnp.tril(jnp.ones((l, l), dtype=jnp.bool_)), 0.0, -1e9).astype(f32)

    out, m_out = layer_forward(x, mask, params)
    out = jax.block_until_ready(out)

    ref = layer_ref(x, mask, params)
    err = float(jnp.max(jnp.abs(out - ref)))
    # slightly relaxed tolerance: approx-reciprocal softmax + rsqrt LayerNorm
    assert err < 2e-3, f"mismatch vs reference: max abs err {err}"

    print("KERNEL_OK")
</pallas_src>

<mosaic_0001>
module attributes {stable_mosaic.version = 11 : i64} {
  func.func @layer_kernel(%arg0: i32, %arg1: memref<1x8x32xf32, #tpu.memory_space<vmem>>, %arg2: memref<8x8xf32, #tpu.memory_space<vmem>>, %arg3: memref<1x32xf32, #tpu.memory_space<vmem>>, %arg4: memref<1x32xf32, #tpu.memory_space<vmem>>, %arg5: memref<32x96xf32, #tpu.memory_space<vmem>>, %arg6: memref<1x96xf32, #tpu.memory_space<vmem>>, %arg7: memref<32x32xf32, #tpu.memory_space<vmem>>, %arg8: memref<1x32xf32, #tpu.memory_space<vmem>>, %arg9: memref<1x32xf32, #tpu.memory_space<vmem>>, %arg10: memref<1x32xf32, #tpu.memory_space<vmem>>, %arg11: memref<32x128xf32, #tpu.memory_space<vmem>>, %arg12: memref<1x128xf32, #tpu.memory_space<vmem>>, %arg13: memref<128x32xf32, #tpu.memory_space<vmem>>, %arg14: memref<1x32xf32, #tpu.memory_space<vmem>>, %arg15: memref<1x8x32xf32, #tpu.memory_space<vmem>>) attributes {dimension_semantics = [#tpu.dimension_semantics<parallel>], iteration_bounds = array<i64: 2>, scalar_prefetch = 0 : i64, scratch_operands = 0 : i64, tpu.core_type = #tpu.core_type<tc>, window_params = [{transform_indices = @transform_0, window_bounds = array<i64: 1, 8, 32>}, {pipeline_mode = #tpu.pipeline_mode<synchronous>, transform_indices = @transform_1, window_bounds = array<i64: 8, 8>}, {pipeline_mode = #tpu.pipeline_mode<synchronous>, transform_indices = @transform_2, window_bounds = array<i64: 1, 32>}, {pipeline_mode = #tpu.pipeline_mode<synchronous>, transform_indices = @transform_3, window_bounds = array<i64: 1, 32>}, {pipeline_mode = #tpu.pipeline_mode<synchronous>, transform_indices = @transform_4, window_bounds = array<i64: 32, 96>}, {pipeline_mode = #tpu.pipeline_mode<synchronous>, transform_indices = @transform_5, window_bounds = array<i64: 1, 96>}, {pipeline_mode = #tpu.pipeline_mode<synchronous>, transform_indices = @transform_6, window_bounds = array<i64: 32, 32>}, {pipeline_mode = #tpu.pipeline_mode<synchronous>, transform_indices = @transform_7, window_bounds = array<i64: 1, 32>}, {pipeline_mode = #tpu.pipeline_mode<synchronous>, transform_indices = @transform_8, window_bounds = array<i64: 1, 32>}, {pipeline_mode = #tpu.pipeline_mode<synchronous>, transform_indices = @transform_9, window_bounds = array<i64: 1, 32>}, {pipeline_mode = #tpu.pipeline_mode<synchronous>, transform_indices = @transform_10, window_bounds = array<i64: 32, 128>}, {pipeline_mode = #tpu.pipeline_mode<synchronous>, transform_indices = @transform_11, window_bounds = array<i64: 1, 128>}, {pipeline_mode = #tpu.pipeline_mode<synchronous>, transform_indices = @transform_12, window_bounds = array<i64: 128, 32>}, {pipeline_mode = #tpu.pipeline_mode<synchronous>, transform_indices = @transform_13, window_bounds = array<i64: 1, 32>}, {transform_indices = @transform_14, window_bounds = array<i64: 1, 8, 32>}]} {
    %c0 = arith.constant 0 : index
    %c0_0 = arith.constant 0 : index
    %c0_1 = arith.constant 0 : index
    %0 = vector.load %arg1[%c0, %c0_0, %c0_1] : memref<1x8x32xf32, #tpu.memory_space<vmem>>, vector<1x8x32xf32>
    %1 = vector.shape_cast %0 : vector<1x8x32xf32> to vector<8x32xf32>
    %c0_2 = arith.constant 0 : index
    %c0_3 = arith.constant 0 : index
    %2 = vector.load %arg2[%c0_2, %c0_3] : memref<8x8xf32, #tpu.memory_space<vmem>>, vector<8x8xf32>
    %c0_4 = arith.constant 0 : index
    %c0_5 = arith.constant 0 : index
    %3 = vector.load %arg3[%c0_4, %c0_5] : memref<1x32xf32, #tpu.memory_space<vmem>>, vector<1x32xf32>
    %c0_6 = arith.constant 0 : index
    %c0_7 = arith.constant 0 : index
    %4 = vector.load %arg4[%c0_6, %c0_7] : memref<1x32xf32, #tpu.memory_space<vmem>>, vector<1x32xf32>
    %cst = arith.constant dense<0.000000e+00> : vector<8xf32>
    %5 = vector.multi_reduction <add>, %1, %cst [1] : vector<8x32xf32> to vector<8xf32>
    %6 = vector.shape_cast %5 : vector<8xf32> to vector<8x1xf32>
    %cst_8 = arith.constant 3.200000e+01 : f32
    %7 = vector.broadcast %cst_8 : f32 to vector<8x1xf32>
    %8 = arith.divf %6, %7 : vector<8x1xf32>
    %9 = arith.mulf %1, %1 : vector<8x32xf32>
    %cst_9 = arith.constant dense<0.000000e+00> : vector<8xf32>
    %10 = vector.multi_reduction <add>, %9, %cst_9 [1] : vector<8x32xf32> to vector<8xf32>
    %11 = vector.shape_cast %10 : vector<8xf32> to vector<8x1xf32>
    %cst_10 = arith.constant 3.200000e+01 : f32
    %12 = vector.broadcast %cst_10 : f32 to vector<8x1xf32>
    %13 = arith.divf %11, %12 : vector<8x1xf32>
    %14 = arith.mulf %8, %8 : vector<8x1xf32>
    %15 = arith.subf %13, %14 : vector<8x1xf32>
    %cst_11 = arith.constant 9.99999974E-6 : f32
    %16 = vector.broadcast %cst_11 : f32 to vector<8x1xf32>
    %17 = arith.addf %15, %16 : vector<8x1xf32>
    %18 = vector.broadcast %8 : vector<8x1xf32> to vector<8x32xf32>
    %19 = arith.subf %1, %18 : vector<8x32xf32>
    %20 = math.rsqrt %17 : vector<8x1xf32>
    %21 = vector.broadcast %20 : vector<8x1xf32> to vector<8x32xf32>
    %22 = arith.mulf %19, %21 : vector<8x32xf32>
    %23 = vector.broadcast %3 : vector<1x32xf32> to vector<8x32xf32>
    %24 = arith.mulf %23, %22 : vector<8x32xf32>
    %25 = vector.broadcast %4 : vector<1x32xf32> to vector<8x32xf32>
    %26 = arith.addf %24, %25 : vector<8x32xf32>
    %c0_12 = arith.constant 0 : index
    %c0_13 = arith.constant 0 : index
    %27 = vector.load %arg5[%c0_12, %c0_13] : memref<32x96xf32, #tpu.memory_space<vmem>>, vector<32x96xf32>
    %cst_14 = arith.constant dense<0.000000e+00> : vector<8x96xf32>
    %28 = tpu.matmul %26, %27, %cst_14 {dimension_numbers = #tpu.dot_dimension_numbers<[1], [0], [0], [1], [0, 0, 1, 1], [], []>} : vector<8x32xf32>, vector<32x96xf32>, vector<8x96xf32> -> vector<8x96xf32>
    %c0_15 = arith.constant 0 : index
    %c0_16 = arith.constant 0 : index
    %29 = vector.load %arg6[%c0_15, %c0_16] : memref<1x96xf32, #tpu.memory_space<vmem>>, vector<1x96xf32>
    %30 = vector.broadcast %29 : vector<1x96xf32> to vector<8x96xf32>
    %31 = arith.addf %28, %30 : vector<8x96xf32>
    %32 = vector.extract_strided_slice %31 {offsets = [0, 0], sizes = [8, 8], strides = [1, 1]} : vector<8x96xf32> to vector<8x8xf32>
    %33 = vector.extract_strided_slice %31 {offsets = [0, 32], sizes = [8, 8], strides = [1, 1]} : vector<8x96xf32> to vector<8x8xf32>
    %34 = vector.extract_strided_slice %31 {offsets = [0, 64], sizes = [8, 8], strides = [1, 1]} : vector<8x96xf32> to vector<8x8xf32>
    %cst_17 = arith.constant dense<0.000000e+00> : vector<8x8xf32>
    %35 = tpu.matmul %32, %33, %cst_17 {dimension_numbers = #tpu.dot_dimension_numbers<[1], [1], [0], [0], [0, 0, 1, 0], [], []>} : vector<8x8xf32>, vector<8x8xf32>, vector<8x8xf32> -> vector<8x8xf32>
    %36 = arith.addf %35, %2 : vector<8x8xf32>
    %cst_18 = arith.constant dense<0xFF800000> : vector<8xf32>
    %37 = vector.multi_reduction <maximumf>, %36, %cst_18 [1] : vector<8x8xf32> to vector<8xf32>
    %38 = vector.shape_cast %37 : vector<8xf32> to vector<8x1xf32>
    %39 = vector.broadcast %38 : vector<8x1xf32> to vector<8x8xf32>
    %40 = arith.subf %36, %39 : vector<8x8xf32>
    %41 = math.exp %40 : vector<8x8xf32>
    %cst_19 = arith.constant dense<0.000000e+00> : vector<8xf32>
    %42 = vector.multi_reduction <add>, %41, %cst_19 [1] : vector<8x8xf32> to vector<8xf32>
    %43 = vector.shape_cast %42 : vector<8xf32> to vector<8x1xf32>
    %cst_20 = arith.constant dense<0.000000e+00> : vector<8x8xf32>
    %44 = tpu.matmul %41, %34, %cst_20 {dimension_numbers = #tpu.dot_dimension_numbers<[1], [0], [0], [1], [0, 0, 1, 1], [], []>} : vector<8x8xf32>, vector<8x8xf32>, vector<8x8xf32> -> vector<8x8xf32>
    %45 = tpu.reciprocal %43 {approx = true} : vector<8x1xf32> -> vector<8x1xf32>
    %46 = vector.broadcast %45 : vector<8x1xf32> to vector<8x8xf32>
    %47 = arith.mulf %44, %46 : vector<8x8xf32>
    %48 = vector.extract_strided_slice %31 {offsets = [0, 8], sizes = [8, 8], strides = [1, 1]} : vector<8x96xf32> to vector<8x8xf32>
    %49 = vector.extract_strided_slice %31 {offsets = [0, 40], sizes = [8, 8], strides = [1, 1]} : vector<8x96xf32> to vector<8x8xf32>
    %50 = vector.extract_strided_slice %31 {offsets = [0, 72], sizes = [8, 8], strides = [1, 1]} : vector<8x96xf32> to vector<8x8xf32>
    %cst_21 = arith.constant dense<0.000000e+00> : vector<8x8xf32>
    %51 = tpu.matmul %48, %49, %cst_21 {dimension_numbers = #tpu.dot_dimension_numbers<[1], [1], [0], [0], [0, 0, 1, 0], [], []>} : vector<8x8xf32>, vector<8x8xf32>, vector<8x8xf32> -> vector<8x8xf32>
    %52 = arith.addf %51, %2 : vector<8x8xf32>
    %cst_22 = arith.constant dense<0xFF800000> : vector<8xf32>
    %53 = vector.multi_reduction <maximumf>, %52, %cst_22 [1] : vector<8x8xf32> to vector<8xf32>
    %54 = vector.shape_cast %53 : vector<8xf32> to vector<8x1xf32>
    %55 = vector.broadcast %54 : vector<8x1xf32> to vector<8x8xf32>
    %56 = arith.subf %52, %55 : vector<8x8xf32>
    %57 = math.exp %56 : vector<8x8xf32>
    %cst_23 = arith.constant dense<0.000000e+00> : vector<8xf32>
    %58 = vector.multi_reduction <add>, %57, %cst_23 [1] : vector<8x8xf32> to vector<8xf32>
    %59 = vector.shape_cast %58 : vector<8xf32> to vector<8x1xf32>
    %cst_24 = arith.constant dense<0.000000e+00> : vector<8x8xf32>
    %60 = tpu.matmul %57, %50, %cst_24 {dimension_numbers = #tpu.dot_dimension_numbers<[1], [0], [0], [1], [0, 0, 1, 1], [], []>} : vector<8x8xf32>, vector<8x8xf32>, vector<8x8xf32> -> vector<8x8xf32>
    %61 = tpu.reciprocal %59 {approx = true} : vector<8x1xf32> -> vector<8x1xf32>
    %62 = vector.broadcast %61 : vector<8x1xf32> to vector<8x8xf32>
    %63 = arith.mulf %60, %62 : vector<8x8xf32>
    %64 = vector.extract_strided_slice %31 {offsets = [0, 16], sizes = [8, 8], strides = [1, 1]} : vector<8x96xf32> to vector<8x8xf32>
    %65 = vector.extract_strided_slice %31 {offsets = [0, 48], sizes = [8, 8], strides = [1, 1]} : vector<8x96xf32> to vector<8x8xf32>
    %66 = vector.extract_strided_slice %31 {offsets = [0, 80], sizes = [8, 8], strides = [1, 1]} : vector<8x96xf32> to vector<8x8xf32>
    %cst_25 = arith.constant dense<0.000000e+00> : vector<8x8xf32>
    %67 = tpu.matmul %64, %65, %cst_25 {dimension_numbers = #tpu.dot_dimension_numbers<[1], [1], [0], [0], [0, 0, 1, 0], [], []>} : vector<8x8xf32>, vector<8x8xf32>, vector<8x8xf32> -> vector<8x8xf32>
    %68 = arith.addf %67, %2 : vector<8x8xf32>
    %cst_26 = arith.constant dense<0xFF800000> : vector<8xf32>
    %69 = vector.multi_reduction <maximumf>, %68, %cst_26 [1] : vector<8x8xf32> to vector<8xf32>
    %70 = vector.shape_cast %69 : vector<8xf32> to vector<8x1xf32>
    %71 = vector.broadcast %70 : vector<8x1xf32> to vector<8x8xf32>
    %72 = arith.subf %68, %71 : vector<8x8xf32>
    %73 = math.exp %72 : vector<8x8xf32>
    %cst_27 = arith.constant dense<0.000000e+00> : vector<8xf32>
    %74 = vector.multi_reduction <add>, %73, %cst_27 [1] : vector<8x8xf32> to vector<8xf32>
    %75 = vector.shape_cast %74 : vector<8xf32> to vector<8x1xf32>
    %cst_28 = arith.constant dense<0.000000e+00> : vector<8x8xf32>
    %76 = tpu.matmul %73, %66, %cst_28 {dimension_numbers = #tpu.dot_dimension_numbers<[1], [0], [0], [1], [0, 0, 1, 1], [], []>} : vector<8x8xf32>, vector<8x8xf32>, vector<8x8xf32> -> vector<8x8xf32>
    %77 = tpu.reciprocal %75 {approx = true} : vector<8x1xf32> -> vector<8x1xf32>
    %78 = vector.broadcast %77 : vector<8x1xf32> to vector<8x8xf32>
    %79 = arith.mulf %76, %78 : vector<8x8xf32>
    %80 = vector.extract_strided_slice %31 {offsets = [0, 24], sizes = [8, 8], strides = [1, 1]} : vector<8x96xf32> to vector<8x8xf32>
    %81 = vector.extract_strided_slice %31 {offsets = [0, 56], sizes = [8, 8], strides = [1, 1]} : vector<8x96xf32> to vector<8x8xf32>
    %82 = vector.extract_strided_slice %31 {offsets = [0, 88], sizes = [8, 8], strides = [1, 1]} : vector<8x96xf32> to vector<8x8xf32>
    %cst_29 = arith.constant dense<0.000000e+00> : vector<8x8xf32>
    %83 = tpu.matmul %80, %81, %cst_29 {dimension_numbers = #tpu.dot_dimension_numbers<[1], [1], [0], [0], [0, 0, 1, 0], [], []>} : vector<8x8xf32>, vector<8x8xf32>, vector<8x8xf32> -> vector<8x8xf32>
    %84 = arith.addf %83, %2 : vector<8x8xf32>
    %cst_30 = arith.constant dense<0xFF800000> : vector<8xf32>
    %85 = vector.multi_reduction <maximumf>, %84, %cst_30 [1] : vector<8x8xf32> to vector<8xf32>
    %86 = vector.shape_cast %85 : vector<8xf32> to vector<8x1xf32>
    %87 = vector.broadcast %86 : vector<8x1xf32> to vector<8x8xf32>
    %88 = arith.subf %84, %87 : vector<8x8xf32>
    %89 = math.exp %88 : vector<8x8xf32>
    %cst_31 = arith.constant dense<0.000000e+00> : vector<8xf32>
    %90 = vector.multi_reduction <add>, %89, %cst_31 [1] : vector<8x8xf32> to vector<8xf32>
    %91 = vector.shape_cast %90 : vector<8xf32> to vector<8x1xf32>
    %cst_32 = arith.constant dense<0.000000e+00> : vector<8x8xf32>
    %92 = tpu.matmul %89, %82, %cst_32 {dimension_numbers = #tpu.dot_dimension_numbers<[1], [0], [0], [1], [0, 0, 1, 1], [], []>} : vector<8x8xf32>, vector<8x8xf32>, vector<8x8xf32> -> vector<8x8xf32>
    %93 = tpu.reciprocal %91 {approx = true} : vector<8x1xf32> -> vector<8x1xf32>
    %94 = vector.broadcast %93 : vector<8x1xf32> to vector<8x8xf32>
    %95 = arith.mulf %92, %94 : vector<8x8xf32>
    %96 = tpu.concatenate %47, %63, %79, %95 in 1 : vector<8x8xf32>, vector<8x8xf32>, vector<8x8xf32>, vector<8x8xf32> -> vector<8x32xf32>
    %c0_33 = arith.constant 0 : index
    %c0_34 = arith.constant 0 : index
    %97 = vector.load %arg7[%c0_33, %c0_34] : memref<32x32xf32, #tpu.memory_space<vmem>>, vector<32x32xf32>
    %cst_35 = arith.constant dense<0.000000e+00> : vector<8x32xf32>
    %98 = tpu.matmul %96, %97, %cst_35 {dimension_numbers = #tpu.dot_dimension_numbers<[1], [0], [0], [1], [0, 0, 1, 1], [], []>} : vector<8x32xf32>, vector<32x32xf32>, vector<8x32xf32> -> vector<8x32xf32>
    %99 = arith.addf %1, %98 : vector<8x32xf32>
    %c0_36 = arith.constant 0 : index
    %c0_37 = arith.constant 0 : index
    %100 = vector.load %arg8[%c0_36, %c0_37] : memref<1x32xf32, #tpu.memory_space<vmem>>, vector<1x32xf32>
    %101 = vector.broadcast %100 : vector<1x32xf32> to vector<8x32xf32>
    %102 = arith.addf %99, %101 : vector<8x32xf32>
    %c0_38 = arith.constant 0 : index
    %c0_39 = arith.constant 0 : index
    %103 = vector.load %arg9[%c0_38, %c0_39] : memref<1x32xf32, #tpu.memory_space<vmem>>, vector<1x32xf32>
    %c0_40 = arith.constant 0 : index
    %c0_41 = arith.constant 0 : index
    %104 = vector.load %arg10[%c0_40, %c0_41] : memref<1x32xf32, #tpu.memory_space<vmem>>, vector<1x32xf32>
    %cst_42 = arith.constant dense<0.000000e+00> : vector<8xf32>
    %105 = vector.multi_reduction <add>, %102, %cst_42 [1] : vector<8x32xf32> to vector<8xf32>
    %106 = vector.shape_cast %105 : vector<8xf32> to vector<8x1xf32>
    %cst_43 = arith.constant 3.200000e+01 : f32
    %107 = vector.broadcast %cst_43 : f32 to vector<8x1xf32>
    %108 = arith.divf %106, %107 : vector<8x1xf32>
    %109 = arith.mulf %102, %102 : vector<8x32xf32>
    %cst_44 = arith.constant dense<0.000000e+00> : vector<8xf32>
    %110 = vector.multi_reduction <add>, %109, %cst_44 [1] : vector<8x32xf32> to vector<8xf32>
    %111 = vector.shape_cast %110 : vector<8xf32> to vector<8x1xf32>
    %cst_45 = arith.constant 3.200000e+01 : f32
    %112 = vector.broadcast %cst_45 : f32 to vector<8x1xf32>
    %113 = arith.divf %111, %112 : vector<8x1xf32>
    %114 = arith.mulf %108, %108 : vector<8x1xf32>
    %115 = arith.subf %113, %114 : vector<8x1xf32>
    %cst_46 = arith.constant 9.99999974E-6 : f32
    %116 = vector.broadcast %cst_46 : f32 to vector<8x1xf32>
    %117 = arith.addf %115, %116 : vector<8x1xf32>
    %118 = vector.broadcast %108 : vector<8x1xf32> to vector<8x32xf32>
    %119 = arith.subf %102, %118 : vector<8x32xf32>
    %120 = math.rsqrt %117 : vector<8x1xf32>
    %121 = vector.broadcast %120 : vector<8x1xf32> to vector<8x32xf32>
    %122 = arith.mulf %119, %121 : vector<8x32xf32>
    %123 = vector.broadcast %103 : vector<1x32xf32> to vector<8x32xf32>
    %124 = arith.mulf %123, %122 : vector<8x32xf32>
    %125 = vector.broadcast %104 : vector<1x32xf32> to vector<8x32xf32>
    %126 = arith.addf %124, %125 : vector<8x32xf32>
    %c0_47 = arith.constant 0 : index
    %c0_48 = arith.constant 0 : index
    %127 = vector.load %arg11[%c0_47, %c0_48] : memref<32x128xf32, #tpu.memory_space<vmem>>, vector<32x128xf32>
    %cst_49 = arith.constant dense<0.000000e+00> : vector<8x128xf32>
    %128 = tpu.matmul %126, %127, %cst_49 {dimension_numbers = #tpu.dot_dimension_numbers<[1], [0], [0], [1], [0, 0, 1, 1], [], []>} : vector<8x32xf32>, vector<32x128xf32>, vector<8x128xf32> -> vector<8x128xf32>
    %c0_50 = arith.constant 0 : index
    %c0_51 = arith.constant 0 : index
    %129 = vector.load %arg12[%c0_50, %c0_51] : memref<1x128xf32, #tpu.memory_space<vmem>>, vector<1x128xf32>
    %130 = vector.broadcast %129 : vector<1x128xf32> to vector<8x128xf32>
    %131 = arith.addf %128, %130 : vector<8x128xf32>
    %cst_52 = arith.constant 5.000000e-01 : f32
    %132 = vector.broadcast %cst_52 : f32 to vector<8x128xf32>
    %133 = arith.mulf %131, %132 : vector<8x128xf32>
    %cst_53 = arith.constant 1.41421354 : f32
    %134 = vector.broadcast %cst_53 : f32 to vector<8x128xf32>
    %135 = arith.divf %131, %134 : vector<8x128xf32>
    %136 = math.erf %135 : vector<8x128xf32>
    %cst_54 = arith.constant 1.000000e+00 : f32
    %137 = vector.broadcast %cst_54 : f32 to vector<8x128xf32>
    %138 = arith.addf %137, %136 : vector<8x128xf32>
    %139 = arith.mulf %133, %138 : vector<8x128xf32>
    %c0_55 = arith.constant 0 : index
    %c0_56 = arith.constant 0 : index
    %140 = vector.load %arg13[%c0_55, %c0_56] : memref<128x32xf32, #tpu.memory_space<vmem>>, vector<128x32xf32>
    %cst_57 = arith.constant dense<0.000000e+00> : vector<8x32xf32>
    %141 = tpu.matmul %139, %140, %cst_57 {dimension_numbers = #tpu.dot_dimension_numbers<[1], [0], [0], [1], [0, 0, 1, 1], [], []>} : vector<8x128xf32>, vector<128x32xf32>, vector<8x32xf32> -> vector<8x32xf32>
    %c0_58 = arith.constant 0 : index
    %c0_59 = arith.constant 0 : index
    %142 = vector.load %arg14[%c0_58, %c0_59] : memref<1x32xf32, #tpu.memory_space<vmem>>, vector<1x32xf32>
    %143 = vector.broadcast %142 : vector<1x32xf32> to vector<8x32xf32>
    %144 = arith.addf %141, %143 : vector<8x32xf32>
    %145 = arith.addf %102, %144 : vector<8x32xf32>
    %c0_60 = arith.constant 0 : index
    %c0_61 = arith.constant 0 : index
    %c0_62 = arith.constant 0 : index
    %146 = vector.load %arg15[%c0_60, %c0_61, %c0_62] : memref<1x8x32xf32, #tpu.memory_space<vmem>>, vector<1x8x32xf32>
    %147 = vector.shape_cast %146 : vector<1x8x32xf32> to vector<8x32xf32>
    %148 = vector.shape_cast %145 : vector<8x32xf32> to vector<1x8x32xf32>
    tpu.vector_store %arg15[%c0_60, %c0_61, %c0_62], %148 {strides = array<i32>} : memref<1x8x32xf32, #tpu.memory_space<vmem>>, vector<1x8x32xf32>,
    return
  }
  func.func @transform_0(%arg0: i32) -> (i32, i32, i32) {
    %c0_i32 = arith.constant 0 : i32
    %c0_i32_0 = arith.constant 0 : i32
    %c0_i32_1 = arith.constant 0 : i32
    return %arg0, %c0_i32, %c0_i32_0 : i32, i32, i32
  }
  func.func @transform_1(%arg0: i32) -> (i32, i32) {
    %c0_i32 = arith.constant 0 : i32
    %c0_i32_0 = arith.constant 0 : i32
    %c0_i32_1 = arith.constant 0 : i32
    return %c0_i32, %c0_i32_0 : i32, i32
  }
  func.func @transform_2(%arg0: i32) -> (i32, i32) {
    %c0_i32 = arith.constant 0 : i32
    %c0_i32_0 = arith.constant 0 : i32
    %c0_i32_1 = arith.constant 0 : i32
    return %c0_i32, %c0_i32_0 : i32, i32
  }
  func.func @transform_3(%arg0: i32) -> (i32, i32) {
    %c0_i32 = arith.constant 0 : i32
    %c0_i32_0 = arith.constant 0 : i32
    %c0_i32_1 = arith.constant 0 : i32
    return %c0_i32, %c0_i32_0 : i32, i32
  }
  func.func @transform_4(%arg0: i32) -> (i32, i32) {
    %c0_i32 = arith.constant 0 : i32
    %c0_i32_0 = arith.constant 0 : i32
    %c0_i32_1 = arith.constant 0 : i32
    return %c0_i32, %c0_i32_0 : i32, i32
  }
  func.func @transform_5(%arg0: i32) -> (i32, i32) {
    %c0_i32 = arith.constant 0 : i32
    %c0_i32_0 = arith.constant 0 : i32
    %c0_i32_1 = arith.constant 0 : i32
    return %c0_i32, %c0_i32_0 : i32, i32
  }
  func.func @transform_6(%arg0: i32) -> (i32, i32) {
    %c0_i32 = arith.constant 0 : i32
    %c0_i32_0 = arith.constant 0 : i32
    %c0_i32_1 = arith.constant 0 : i32
    return %c0_i32, %c0_i32_0 : i32, i32
  }
  func.func @transform_7(%arg0: i32) -> (i32, i32) {
    %c0_i32 = arith.constant 0 : i32
    %c0_i32_0 = arith.constant 0 : i32
    %c0_i32_1 = arith.constant 0 : i32
    return %c0_i32, %c0_i32_0 : i32, i32
  }
  func.func @transform_8(%arg0: i32) -> (i32, i32) {
    %c0_i32 = arith.constant 0 : i32
    %c0_i32_0 = arith.constant 0 : i32
    %c0_i32_1 = arith.constant 0 : i32
    return %c0_i32, %c0_i32_0 : i32, i32
  }
  func.func @transform_9(%arg0: i32) -> (i32, i32) {
    %c0_i32 = arith.constant 0 : i32
    %c0_i32_0 = arith.constant 0 : i32
    %c0_i32_1 = arith.constant 0 : i32
    return %c0_i32, %c0_i32_0 : i32, i32
  }
  func.func @transform_10(%arg0: i32) -> (i32, i32) {
    %c0_i32 = arith.constant 0 : i32
    %c0_i32_0 = arith.constant 0 : i32
    %c0_i32_1 = arith.constant 0 : i32
    return %c0_i32, %c0_i32_0 : i32, i32
  }
  func.func @transform_11(%arg0: i32) -> (i32, i32) {
    %c0_i32 = arith.constant 0 : i32
    %c0_i32_0 = arith.constant 0 : i32
    %c0_i32_1 = arith.constant 0 : i32
    return %c0_i32, %c0_i32_0 : i32, i32
  }
  func.func @transform_12(%arg0: i32) -> (i32, i32) {
    %c0_i32 = arith.constant 0 : i32
    %c0_i32_0 = arith.constant 0 : i32
    %c0_i32_1 = arith.constant 0 : i32
    return %c0_i32, %c0_i32_0 : i32, i32
  }
  func.func @transform_13(%arg0: i32) -> (i32, i32) {
    %c0_i32 = arith.constant 0 : i32
    %c0_i32_0 = arith.constant 0 : i32
    %c0_i32_1 = arith.constant 0 : i32
    return %c0_i32, %c0_i32_0 : i32, i32
  }
  func.func @transform_14(%arg0: i32) -> (i32, i32, i32) {
    %c0_i32 = arith.constant 0 : i32
    %c0_i32_0 = arith.constant 0 : i32
    %c0_i32_1 = arith.constant 0 : i32
    return %arg0, %c0_i32, %c0_i32_0 : i32, i32, i32
  }
}

</mosaic_0001>

<llo_original>
// kernel: tpu_custom_call.1
$region0: #{tpu_custom_call.1}
  #allocation0 [shape = 'u32[]', space=smem, size = 0x4, offset = 0x4, fixed_abs, tag = 'smem constant byte address 0x4 - core index']
  #allocation1 [shape = 'u32[144,128]{1,0:T(1,128)}', space=vmem, size = 0x12000, scoped, tag = 'internal scratch']
  %s0 = inlined_call_operand.vmem [shape: f32[2,8,32], index: 0, kind: input, shape index: {}]
  %s1 = inlined_call_operand.vmem [shape: f32[8,8], index: 1, kind: input, shape index: {}]
  %s2 = inlined_call_operand.vmem [shape: f32[1,32], index: 2, kind: input, shape index: {}]
  %s3 = inlined_call_operand.vmem [shape: f32[1,32], index: 3, kind: input, shape index: {}]
  %s4 = inlined_call_operand.vmem [shape: f32[32,96], index: 4, kind: input, shape index: {}]
  %s5 = inlined_call_operand.vmem [shape: f32[1,96], index: 5, kind: input, shape index: {}]
  %s6 = inlined_call_operand.vmem [shape: f32[32,32], index: 6, kind: input, shape index: {}]
  %s7 = inlined_call_operand.vmem [shape: f32[1,32], index: 7, kind: input, shape index: {}]
  %s8 = inlined_call_operand.vmem [shape: f32[1,32], index: 8, kind: input, shape index: {}]
  %s9 = inlined_call_operand.vmem [shape: f32[1,32], index: 9, kind: input, shape index: {}]
  %s10 = inlined_call_operand.vmem [shape: f32[32,128], index: 10, kind: input, shape index: {}]
  %s11 = inlined_call_operand.vmem [shape: f32[1,128], index: 11, kind: input, shape index: {}]
  %s12 = inlined_call_operand.vmem [shape: f32[128,32], index: 12, kind: input, shape index: {}]
  %s13 = inlined_call_operand.vmem [shape: f32[1,32], index: 13, kind: input, shape index: {}]
  %s14 = inlined_call_operand.hbm [shape: f32[2,8,32], index: 14, kind: output, shape index: {}]
  %s15 = sld [smem:[#allocation0]]
  $region89: #{tpu_custom_call.1} parent=0
    _
  %s17 = ssub.s32 1, %s15
  %s18 = scalar_select 0, %s17, %s15
  $region1: #{tpu_custom_call.1} parent=0
    #allocation2 [shape = 'u8[8192]{0}', space=vmem, size = 0x2000, scoped, tag = 'output window, operand 0']
    #allocation3 [shape = 's32[2]{0}', space=sflag, size = 0x8, scoped, tag = 'scoped memory for tpu_custom_call.1']
    %19 = vsyncpa [#allocation3], 0
    %s20 = scalar_lea.sflag [#allocation3], 1
    %21 = vsyncpa %s20, 0
    loop: start=0, step=1, limit=4
    $region2: #{tpu_custom_call.1} parent=1 // loop_pre_header
      _
    $region3: #{tpu_custom_call.1} parent=1 // loop_header
      %s23 = sphi 0, %s27
      %p24 = scmp.ge.s32.totalorder %s23, 4
      %s33 = sphi 0, %s35
      %s36 = sphi 0, %s33
      %s37 = sphi 0, %s36
      %s53 = sphi 0, %s37
      %s57 = sphi 0, %s57
      %s59 = sphi 0, %s57
      %s60 = sphi 0, %s59
      %s74 = sphi 0, %s60
      %s78 = sphi 0, %s78
      %s80 = sphi 0, %s78
      %s81 = sphi 0, %s80
      %s95 = sphi 0, %s81
      %s99 = sphi 0, %s99
      %s101 = sphi 0, %s99
      %s102 = sphi 0, %s101
      %s116 = sphi 0, %s102
      %s120 = sphi 0, %s120
      %s122 = sphi 0, %s120
      %s123 = sphi 0, %s122
      %s137 = sphi 0, %s123
      %s141 = sphi 0, %s141
      %s143 = sphi 0, %s141
      %s144 = sphi 0, %s143
      %s158 = sphi 0, %s144
      %s162 = sphi 0, %s162
      %s164 = sphi 0, %s162
      %s165 = sphi 0, %s164
      %s179 = sphi 0, %s165
      %s183 = sphi 0, %s183
      %s185 = sphi 0, %s183
      %s186 = sphi 0, %s185
      %s200 = sphi 0, %s186
      %s204 = sphi 0, %s204
      %s206 = sphi 0, %s204
      %s207 = sphi 0, %s206
      %s221 = sphi 0, %s207
      %s225 = sphi 0, %s225
      %s227 = sphi 0, %s225
      %s228 = sphi 0, %s227
      %s242 = sphi 0, %s228
      %s246 = sphi 0, %s246
      %s248 = sphi 0, %s246
      %s249 = sphi 0, %s248
      %s263 = sphi 0, %s249
      %s267 = sphi 0, %s267
      %s269 = sphi 0, %s267
      %s270 = sphi 0, %s269
      %s284 = sphi 0, %s270
      %s288 = sphi 0, %s288
      %s290 = sphi 0, %s288
      %s291 = sphi 0, %s290
      %s305 = sphi 0, %s291
      %s309 = sphi 0, %s309
      %s311 = sphi 0, %s309
      %s312 = sphi 0, %s311
      %s326 = sphi 0, %s312
      %s332 = sphi 0, %s334
      %s335 = sphi 0, %s332
      %s336 = sphi 0, %s335
      %s352 = sphi 0, %s336
    $region4: #{tpu_custom_call.1} parent=1 // loop_header_branch
      %26 = sbr.rel (%p24) target = $region8
    $region5: #{tpu_custom_call.1} parent=1 // loop_body
      %s28 = ssub.s32 %s23, 1
      %s29 = ssub.s32 %s23, 2
      %s30 = sadd.s32 %s23, 1
      %s31 = ssub.s32 %s23, %s30
      %p32 = scmp.eq.s32.totalorder %s31, 0
      %s34 = sadd.s32 %s33, 1
      %s35 = scalar_select %p32, %s33, %s34
      %p38 = pneg %p32
      %p39 = scmp.eq.s32.totalorder %s23, 1
      %p40 = por %p38, %p39
      %p41 = scmp.ne.s32.totalorder %s33, %s36
      %p42 = scmp.eq.s32.totalorder %s23, 0
      %p43 = por %p41, %p42
      %p44 = scmp.ne.s32.totalorder %s33, %s36
      %p45 = scmp.eq.s32.totalorder %s28, 1
      %p46 = por %p44, %p45
      %p47 = scmp.ne.s32.totalorder %s36, %s37
      %p48 = scmp.eq.s32.totalorder %s28, 0
      %p49 = por %p47, %p48
      %p50 = scmp.ne.s32.totalorder %s36, %s37
      %p51 = scmp.eq.s32.totalorder %s29, 1
      %p52 = por %p50, %p51
      %p54 = scmp.ne.s32.totalorder %s37, %s53
      %p55 = scmp.eq.s32.totalorder %s29, 0
      %p56 = por %p54, %p55
      %s58 = sadd.s32 %s57, 1
      %p61 = scmp.eq.s32.totalorder %s23, 1
      %p62 = scmp.ne.s32.totalorder %s57, %s59
      %p63 = scmp.eq.s32.totalorder %s23, 0
      %p64 = por %p62, %p63
      %p65 = scmp.ne.s32.totalorder %s57, %s59
      %p66 = scmp.eq.s32.totalorder %s28, 1
      %p67 = por %p65, %p66
      %p68 = scmp.ne.s32.totalorder %s59, %s60
      %p69 = scmp.eq.s32.totalorder %s28, 0
      %p70 = por %p68, %p69
      %p71 = scmp.ne.s32.totalorder %s59, %s60
      %p72 = scmp.eq.s32.totalorder %s29, 1
      %p73 = por %p71, %p72
      %p75 = scmp.ne.s32.totalorder %s60, %s74
      %p76 = scmp.eq.s32.totalorder %s29, 0
      %p77 = por %p75, %p76
      %s79 = sadd.s32 %s78, 1
      %p82 = scmp.eq.s32.totalorder %s23, 1
      %p83 = scmp.ne.s32.totalorder %s78, %s80
      %p84 = scmp.eq.s32.totalorder %s23, 0
      %p85 = por %p83, %p84
      %p86 = scmp.ne.s32.totalorder %s78, %s80
      %p87 = scmp.eq.s32.totalorder %s28, 1
      %p88 = por %p86, %p87
      %p89 = scmp.ne.s32.totalorder %s80, %s81
      %p90 = scmp.eq.s32.totalorder %s28, 0
      %p91 = por %p89, %p90
      %p92 = scmp.ne.s32.totalorder %s80, %s81
      %p93 = scmp.eq.s32.totalorder %s29, 1
      %p94 = por %p92, %p93
      %p96 = scmp.ne.s32.totalorder %s81, %s95
      %p97 = scmp.eq.s32.totalorder %s29, 0
      %p98 = por %p96, %p97
      %s100 = sadd.s32 %s99, 1
      %p103 = scmp.eq.s32.totalorder %s23, 1
      %p104 = scmp.ne.s32.totalorder %s99, %s101
      %p105 = scmp.eq.s32.totalorder %s23, 0
      %p106 = por %p104, %p105
      %p107 = scmp.ne.s32.totalorder %s99, %s101
      %p108 = scmp.eq.s32.totalorder %s28, 1
      %p109 = por %p107, %p108
      %p110 = scmp.ne.s32.totalorder %s101, %s102
      %p111 = scmp.eq.s32.totalorder %s28, 0
      %p112 = por %p110, %p111
      %p113 = scmp.ne.s32.totalorder %s101, %s102
      %p114 = scmp.eq.s32.totalorder %s29, 1
      %p115 = por %p113, %p114
      %p117 = scmp.ne.s32.totalorder %s102, %s116
      %p118 = scmp.eq.s32.totalorder %s29, 0
      %p119 = por %p117, %p118
      %s121 = sadd.s32 %s120, 1
      %p124 = scmp.eq.s32.totalorder %s23, 1
      %p125 = scmp.ne.s32.totalorder %s120, %s122
      %p126 = scmp.eq.s32.totalorder %s23, 0
      %p127 = por %p125, %p126
      %p128 = scmp.ne.s32.totalorder %s120, %s122
      %p129 = scmp.eq.s32.totalorder %s28, 1
      %p130 = por %p128, %p129
      %p131 = scmp.ne.s32.totalorder %s122, %s123
      %p132 = scmp.eq.s32.totalorder %s28, 0
      %p133 = por %p131, %p132
      %p134 = scmp.ne.s32.totalorder %s122, %s123
      %p135 = scmp.eq.s32.totalorder %s29, 1
      %p136 = por %p134, %p135
      %p138 = scmp.ne.s32.totalorder %s123, %s137
      %p139 = scmp.eq.s32.totalorder %s29, 0
      %p140 = por %p138, %p139
      %s142 = sadd.s32 %s141, 1
      %p145 = scmp.eq.s32.totalorder %s23, 1
      %p146 = scmp.ne.s32.totalorder %s141, %s143
      %p147 = scmp.eq.s32.totalorder %s23, 0
      %p148 = por %p146, %p147
      %p149 = scmp.ne.s32.totalorder %s141, %s143
      %p150 = scmp.eq.s32.totalorder %s28, 1
      %p151 = por %p149, %p150
      %p152 = scmp.ne.s32.totalorder %s143, %s144
      %p153 = scmp.eq.s32.totalorder %s28, 0
      %p154 = por %p152, %p153
      %p155 = scmp.ne.s32.totalorder %s143, %s144
      %p156 = scmp.eq.s32.totalorder %s29, 1
      %p157 = por %p155, %p156
      %p159 = scmp.ne.s32.totalorder %s144, %s158
      %p160 = scmp.eq.s32.totalorder %s29, 0
      %p161 = por %p159, %p160
      %s163 = sadd.s32 %s162, 1
      %p166 = scmp.eq.s32.totalorder %s23, 1
      %p167 = scmp.ne.s32.totalorder %s162, %s164
      %p168 = scmp.eq.s32.totalorder %s23, 0
      %p169 = por %p167, %p168
      %p170 = scmp.ne.s32.totalorder %s162, %s164
      %p171 = scmp.eq.s32.totalorder %s28, 1
      %p172 = por %p170, %p171
      %p173 = scmp.ne.s32.totalorder %s164, %s165
      %p174 = scmp.eq.s32.totalorder %s28, 0
      %p175 = por %p173, %p174
      %p176 = scmp.ne.s32.totalorder %s164, %s165
      %p177 = scmp.eq.s32.totalorder %s29, 1
      %p178 = por %p176, %p177
      %p180 = scmp.ne.s32.totalorder %s165, %s179
      %p181 = scmp.eq.s32.totalorder %s29, 0
      %p182 = por %p180, %p181
      %s184 = sadd.s32 %s183, 1
      %p187 = scmp.eq.s32.totalorder %s23, 1
      %p188 = scmp.ne.s32.totalorder %s183, %s185
      %p189 = scmp.eq.s32.totalorder %s23, 0
      %p190 = por %p188, %p189
      %p191 = scmp.ne.s32.totalorder %s183, %s185
      %p192 = scmp.eq.s32.totalorder %s28, 1
      %p193 = por %p191, %p192
      %p194 = scmp.ne.s32.totalorder %s185, %s186
      %p195 = scmp.eq.s32.totalorder %s28, 0
      %p196 = por %p194, %p195
      %p197 = scmp.ne.s32.totalorder %s185, %s186
      %p198 = scmp.eq.s32.totalorder %s29, 1
      %p199 = por %p197, %p198
      %p201 = scmp.ne.s32.totalorder %s186, %s200
      %p202 = scmp.eq.s32.totalorder %s29, 0
      %p203 = por %p201, %p202
      %s205 = sadd.s32 %s204, 1
      %p208 = scmp.eq.s32.totalorder %s23, 1
      %p209 = scmp.ne.s32.totalorder %s204, %s206
      %p210 = scmp.eq.s32.totalorder %s23, 0
      %p211 = por %p209, %p210
      %p212 = scmp.ne.s32.totalorder %s204, %s206
      %p213 = scmp.eq.s32.totalorder %s28, 1
      %p214 = por %p212, %p213
      %p215 = scmp.ne.s32.totalorder %s206, %s207
      %p216 = scmp.eq.s32.totalorder %s28, 0
      %p217 = por %p215, %p216
      %p218 = scmp.ne.s32.totalorder %s206, %s207
      %p219 = scmp.eq.s32.totalorder %s29, 1
      %p220 = por %p218, %p219
      %p222 = scmp.ne.s32.totalorder %s207, %s221
      %p223 = scmp.eq.s32.totalorder %s29, 0
      %p224 = por %p222, %p223
      %s226 = sadd.s32 %s225, 1
      %p229 = scmp.eq.s32.totalorder %s23, 1
      %p230 = scmp.ne.s32.totalorder %s225, %s227
      %p231 = scmp.eq.s32.totalorder %s23, 0
      %p232 = por %p230, %p231
      %p233 = scmp.ne.s32.totalorder %s225, %s227
      %p234 = scmp.eq.s32.totalorder %s28, 1
      %p235 = por %p233, %p234
      %p236 = scmp.ne.s32.totalorder %s227, %s228
      %p237 = scmp.eq.s32.totalorder %s28, 0
      %p238 = por %p236, %p237
      %p239 = scmp.ne.s32.totalorder %s227, %s228
      %p240 = scmp.eq.s32.totalorder %s29, 1
      %p241 = por %p239, %p240
      %p243 = scmp.ne.s32.totalorder %s228, %s242
      %p244 = scmp.eq.s32.totalorder %s29, 0
      %p245 = por %p243, %p244
      %s247 = sadd.s32 %s246, 1
      %p250 = scmp.eq.s32.totalorder %s23, 1
      %p251 = scmp.ne.s32.totalorder %s246, %s248
      %p252 = scmp.eq.s32.totalorder %s23, 0
      %p253 = por %p251, %p252
      %p254 = scmp.ne.s32.totalorder %s246, %s248
      %p255 = scmp.eq.s32.totalorder %s28, 1
      %p256 = por %p254, %p255
      %p257 = scmp.ne.s32.totalorder %s248, %s249
      %p258 = scmp.eq.s32.totalorder %s28, 0
      %p259 = por %p257, %p258
      %p260 = scmp.ne.s32.totalorder %s248, %s249
      %p261 = scmp.eq.s32.totalorder %s29, 1
      %p262 = por %p260, %p261
      %p264 = scmp.ne.s32.totalorder %s249, %s263
      %p265 = scmp.eq.s32.totalorder %s29, 0
      %p266 = por %p264, %p265
      %s268 = sadd.s32 %s267, 1
      %p271 = scmp.eq.s32.totalorder %s23, 1
      %p272 = scmp.ne.s32.totalorder %s267, %s269
      %p273 = scmp.eq.s32.totalorder %s23, 0
      %p274 = por %p272, %p273
      %p275 = scmp.ne.s32.totalorder %s267, %s269
      %p276 = scmp.eq.s32.totalorder %s28, 1
      %p277 = por %p275, %p276
      %p278 = scmp.ne.s32.totalorder %s269, %s270
      %p279 = scmp.eq.s32.totalorder %s28, 0
      %p280 = por %p278, %p279
      %p281 = scmp.ne.s32.totalorder %s269, %s270
      %p282 = scmp.eq.s32.totalorder %s29, 1
      %p283 = por %p281, %p282
      %p285 = scmp.ne.s32.totalorder %s270, %s284
      %p286 = scmp.eq.s32.totalorder %s29, 0
      %p287 = por %p285, %p286
      %s289 = sadd.s32 %s288, 1
      %p292 = scmp.eq.s32.totalorder %s23, 1
      %p293 = scmp.ne.s32.totalorder %s288, %s290
      %p294 = scmp.eq.s32.totalorder %s23, 0
      %p295 = por %p293, %p294
      %p296 = scmp.ne.s32.totalorder %s288, %s290
      %p297 = scmp.eq.s32.totalorder %s28, 1
      %p298 = por %p296, %p297
      %p299 = scmp.ne.s32.totalorder %s290, %s291
      %p300 = scmp.eq.s32.totalorder %s28, 0
      %p301 = por %p299, %p300
      %p302 = scmp.ne.s32.totalorder %s290, %s291
      %p303 = scmp.eq.s32.totalorder %s29, 1
      %p304 = por %p302, %p303
      %p306 = scmp.ne.s32.totalorder %s291, %s305
      %p307 = scmp.eq.s32.totalorder %s29, 0
      %p308 = por %p306, %p307
      %s310 = sadd.s32 %s309, 1
      %p313 = scmp.eq.s32.totalorder %s23, 1
      %p314 = scmp.ne.s32.totalorder %s309, %s311
      %p315 = scmp.eq.s32.totalorder %s23, 0
      %p316 = por %p314, %p315
      %p317 = scmp.ne.s32.totalorder %s309, %s311
      %p318 = scmp.eq.s32.totalorder %s28, 1
      %p319 = por %p317, %p318
      %p320 = scmp.ne.s32.totalorder %s311, %s312
      %p321 = scmp.eq.s32.totalorder %s28, 0
      %p322 = por %p320, %p321
      %p323 = scmp.ne.s32.totalorder %s311, %s312
      %p324 = scmp.eq.s32.totalorder %s29, 1
      %p325 = por %p323, %p324
      %p327 = scmp.ne.s32.totalorder %s312, %s326
      %p328 = scmp.eq.s32.totalorder %s29, 0
      %p329 = por %p327, %p328
      %s330 = ssub.s32 %s23, %s30
      %p331 = scmp.eq.s32.totalorder %s330, 0
      %s333 = sadd.s32 %s332, 1
      %s334 = scalar_select %p331, %s332, %s333
      %p337 = pneg %p331
      %p338 = scmp.eq.s32.totalorder %s23, 1
      %p339 = por %p337, %p338
      %p340 = scmp.ne.s32.totalorder %s332, %s335
      %p341 = scmp.eq.s32.totalorder %s23, 0
      %p342 = por %p340, %p341
      %p343 = scmp.ne.s32.totalorder %s332, %s335
      %p344 = scmp.eq.s32.totalorder %s28, 1
      %p345 = por %p343, %p344
      %p346 = scmp.ne.s32.totalorder %s335, %s336
      %p347 = scmp.eq.s32.totalorder %s28, 0
      %p348 = por %p346, %p347
      %p349 = scmp.ne.s32.totalorder %s335, %s336
      %p350 = scmp.eq.s32.totalorder %s29, 1
      %p351 = por %p349, %p350
      %p353 = scmp.ne.s32.totalorder %s336, %s352
      %p354 = scmp.eq.s32.totalorder %s29, 0
      %p355 = por %p353, %p354
      %p356 = scmp.le.s32.totalorder 1, %s23
      %p357 = scmp.lt.s32.totalorder %s23, 3
      %p358 = pnand %p356, %p357
      %p359 = pneg %p358
      // Predicated region
      $region9: #{tpu_custom_call.1} parent=5 // pred_check
        _
      $region10: #{tpu_custom_call.1} parent=5 // pred_check_branch
        %361 = sbr.rel (%p358) target = $region12
      $region11: #{tpu_custom_call.1} parent=5 // pred_region
        %s362 = ssub.s32 %s23, 1
        // Predicated region
        $region13: #{tpu_custom_call.1} parent=11 // pred_check
          %p363 = pneg %p70
        $region14: #{tpu_custom_call.1} parent=11 // pred_check_branch
          %365 = sbr.rel (%p363) target = $region16
        $region15: #{tpu_custom_call.1} parent=11 // pred_region
          _
        $region16: #{tpu_custom_call.1} parent=11 // pred_fallthru
          _
        // Predicated region
        $region17: #{tpu_custom_call.1} parent=11 // pred_check
          %p366 = pneg %p91
        $region18: #{tpu_custom_call.1} parent=11 // pred_check_branch
          %368 = sbr.rel (%p366) target = $region20
        $region19: #{tpu_custom_call.1} parent=11 // pred_region
          _
        $region20: #{tpu_custom_call.1} parent=11 // pred_fallthru
          _
        // Predicated region
        $region21: #{tpu_custom_call.1} parent=11 // pred_check
          %p369 = pneg %p112
        $region22: #{tpu_custom_call.1} parent=11 // pred_check_branch
          %371 = sbr.rel (%p369) target = $region24
        $region23: #{tpu_custom_call.1} parent=11 // pred_region
          _
        $region24: #{tpu_custom_call.1} parent=11 // pred_fallthru
          _
        // Predicated region
        $region25: #{tpu_custom_call.1} parent=11 // pred_check
          %p372 = pneg %p133
        $region26: #{tpu_custom_call.1} parent=11 // pred_check_branch
          %374 = sbr.rel (%p372) target = $region28
        $region27: #{tpu_custom_call.1} parent=11 // pred_region
          _
        $region28: #{tpu_custom_call.1} parent=11 // pred_fallthru
          _
        // Predicated region
        $region29: #{tpu_custom_call.1} parent=11 // pred_check
          %p375 = pneg %p154
        $region30: #{tpu_custom_call.1} parent=11 // pred_check_branch
          %377 = sbr.rel (%p375) target = $region32
        $region31: #{tpu_custom_call.1} parent=11 // pred_region
          _
        $region32: #{tpu_custom_call.1} parent=11 // pred_fallthru
          _
        // Predicated region
        $region33: #{tpu_custom_call.1} parent=11 // pred_check
          %p378 = pneg %p175
        $region34: #{tpu_custom_call.1} parent=11 // pred_check_branch
          %380 = sbr.rel (%p378) target = $region36
        $region35: #{tpu_custom_call.1} parent=11 // pred_region
          _
        $region36: #{tpu_custom_call.1} parent=11 // pred_fallthru
          _
        // Predicated region
        $region37: #{tpu_custom_call.1} parent=11 // pred_check
          %p381 = pneg %p196
        $region38: #{tpu_custom_call.1} parent=11 // pred_check_branch
          %383 = sbr.rel (%p381) target = $region40
        $region39: #{tpu_custom_call.1} parent=11 // pred_region
          _
        $region40: #{tpu_custom_call.1} parent=11 // pred_fallthru
          _
        // Predicated region
        $region41: #{tpu_custom_call.1} parent=11 // pred_check
          %p384 = pneg %p217
        $region42: #{tpu_custom_call.1} parent=11 // pred_check_branch
          %386 = sbr.rel (%p384) target = $region44
        $region43: #{tpu_custom_call.1} parent=11 // pred_region
          _
        $region44: #{tpu_custom_call.1} parent=11 // pred_fallthru
          _
        // Predicated region
        $region45: #{tpu_custom_call.1} parent=11 // pred_check
          %p387 = pneg %p238
        $region46: #{tpu_custom_call.1} parent=11 // pred_check_branch
          %389 = sbr.rel (%p387) target = $region48
        $region47: #{tpu_custom_call.1} parent=11 // pred_region
          _
        $region48: #{tpu_custom_call.1} parent=11 // pred_fallthru
          _
        // Predicated region
        $region49: #{tpu_custom_call.1} parent=11 // pred_check
          %p390 = pneg %p259
        $region50: #{tpu_custom_call.1} parent=11 // pred_check_branch
          %392 = sbr.rel (%p390) target = $region52
        $region51: #{tpu_custom_call.1} parent=11 // pred_region
          _
        $region52: #{tpu_custom_call.1} parent=11 // pred_fallthru
          _
        // Predicated region
        $region53: #{tpu_custom_call.1} parent=11 // pred_check
          %p393 = pneg %p280
        $region54: #{tpu_custom_call.1} parent=11 // pred_check_branch
          %395 = sbr.rel (%p393) target = $region56
        $region55: #{tpu_custom_call.1} parent=11 // pred_region
          _
        $region56: #{tpu_custom_call.1} parent=11 // pred_fallthru
          _
        // Predicated region
        $region57: #{tpu_custom_call.1} parent=11 // pred_check
          %p396 = pneg %p301
        $region58: #{tpu_custom_call.1} parent=11 // pred_check_branch
          %398 = sbr.rel (%p396) target = $region60
        $region59: #{tpu_custom_call.1} parent=11 // pred_region
          _
        $region60: #{tpu_custom_call.1} parent=11 // pred_fallthru
          _
        // Predicated region
        $region61: #{tpu_custom_call.1} parent=11 // pred_check
          %p399 = pneg %p322
        $region62: #{tpu_custom_call.1} parent=11 // pred_check_branch
          %401 = sbr.rel (%p399) target = $region64
        $region63: #{tpu_custom_call.1} parent=11 // pred_region
          _
        $region64: #{tpu_custom_call.1} parent=11 // pred_fallthru
          _
      $region12: #{tpu_custom_call.1} parent=5 // pred_fallthru
        _
      %p402 = scmp.lt.s32.totalorder %s23, 2
      // Predicated region
      $region65: #{tpu_custom_call.1} parent=5 // pred_check
        %p403 = pneg %p402
      $region66: #{tpu_custom_call.1} parent=5 // pred_check_branch
        %405 = sbr.rel (%p403) target = $region68
      $region67: #{tpu_custom_call.1} parent=5 // pred_region
        // Predicated region
        $region69: #{tpu_custom_call.1} parent=67 // pred_check
          %p406 = pneg %p43
        $region70: #{tpu_custom_call.1} parent=67 // pred_check_branch
          %408 = sbr.rel (%p406) target = $region72
        $region71: #{tpu_custom_call.1} parent=67 // pred_region
          %p409 = scmp.lt.s32.totalorder %s23, 1
          %s410 = scalar_select %p409, %s23, 1
          %s411 = smul.addr %s410, 8
          %s412 = scalar_lea.vmem %s0, %s411
        $region72: #{tpu_custom_call.1} parent=67 // pred_fallthru
          _
      $region68: #{tpu_custom_call.1} parent=5 // pred_fallthru
        _
      %p413 = scmp.le.s32.totalorder 1, %s23
      %p414 = scmp.lt.s32.totalorder %s23, 3
      %p415 = pnand %p413, %p414
      %p416 = pneg %p415
      // Predicated region
      $region73: #{tpu_custom_call.1} parent=5 // pred_check
        _
      $region74: #{tpu_custom_call.1} parent=5 // pred_check_branch
        %418 = sbr.rel (%p415) target = $region76
      $region75: #{tpu_custom_call.1} parent=5 // pred_region
        %s419 = ssub.s32 %s23, 1
        %p420 = scmp.lt.s32.totalorder %s28, 1
        %s421 = scalar_select %p420, %s28, 1
        %s422 = smul.addr %s421, 8
        %s423 = scalar_lea.vmem %s0, %s422
        %p424 = pneg %p49
        %p425 = pneg %p46
        %p426 = pneg %p70
        %p427 = pneg %p67
        %p428 = pneg %p91
        %p429 = pneg %p88
        %p430 = pneg %p112
        %p431 = pneg %p109
        %p432 = pneg %p133
        %p433 = pneg %p130
        %p434 = pneg %p154
        %p435 = pneg %p151
        %p436 = pneg %p175
        %p437 = pneg %p172
        %p438 = pneg %p196
        %p439 = pneg %p193
        %p440 = pneg %p217
        %p441 = pneg %p214
        %p442 = pneg %p238
        %p443 = pneg %p235
        %p444 = pneg %p259
        %p445 = pneg %p256
        %p446 = pneg %p280
        %p447 = pneg %p277
        %p448 = pneg %p301
        %p449 = pneg %p298
        %p450 = pneg %p322
        %p451 = pneg %p319
        %p452 = pneg %p348
        %p453 = pneg %p345
        %s454 = sand.u32 %s335, 1
        %s455 = scalar_lea.sflag [#allocation3], %s454
        %s456 = sand.u32 %s335, 1
        %s457 = smul.addr %s456, 8
        %s458 = scalar_lea.vmem [#allocation2], %s457
        %p459 = scmp.lt.s32.totalorder %s28, 1
        %s460 = scalar_select %p459, %s28, 1
        %s461 = smul.addr %s460, 8
        %s462 = scalar_lea.vmem %s0, %s461
        %v463 = vld [vmem:[%s462] sm:$0xff]
        %v464 = vld [vmem:[%s1] sm:$0xff]
        %v465 = vld [vmem:[%s2] sm:$0x1]
        %v466 = vld [vmem:[%s3] sm:$0x1]
        %vm467 = vcmask 261120
        %v468 = vsel %vm467, %v463, 0.0
        %469 = vadd.xlane.f32.xlu0 %v468
        %v470 = vpop.xlane.xlu0 %469
        %v471 = vrcp.pop 32.0
        %v472 = vmul.f32 %v470, %v471
        %v473 = vmul.f32 %v463, %v463
        %v474 = vsel %vm467, %v473, 0.0
        %475 = vadd.xlane.f32.xlu0 %v474
        %v476 = vpop.xlane.xlu0 %475
        %v477 = vmul.f32 %v476, %v471
        %v478 = vmul.f32 %v472, %v472
        %v479 = vsub.f32 %v477, %v478
        %v480 = vadd.f32 %v479, 1e-05
        %v481 = vsub.f32 %v463, %v472
        %v482 = vrsqrt.pop %v480
        %v483 = vmul.f32 %v481, %v482
        %v485 = vlaneseq
        %v486 = vshrl.u32 %v485, 7
        %v487 = vsub.s32 0, %v486
        %v488 = vrot.slane %v465, %v487
        %v490 = vmul.f32 %v488, %v483
        %v492 = vlaneseq
        %v493 = vshrl.u32 %v492, 7
        %v494 = vsub.s32 0, %v493
        %v495 = vrot.slane %v466, %v494
        %v497 = vadd.f32 %v490, %v495
        %v498 = vld [vmem:[%s4] sm:$0xff]
        %v499 = vld [vmem:[%s4 + $0x8] sm:$0xff]
        %v500 = vld [vmem:[%s4 + $0x10] sm:$0xff]
        %v501 = vld [vmem:[%s4 + $0x18] sm:$0xff]
        %v502 = vld [vmem:[%s5] sm:$0x1]
        %v504 = vlaneseq
        %v505 = vshrl.u32 %v504, 7
        %v506 = vsub.s32 0, %v505
        %v507 = vrot.slane %v502, %v506
        %v510 = vsel %vm467, %v497, 0
        %512 = vmatprep.subr.mxu0 0.0
        %513 = vmatpush1.msra.mxu0 0.0
        %514 = vmatprep.subr.mxu0 0.0
        %515 = vmatpush1.msra.mxu0 0.0
        %516 = vmatprep.subr.mxu0 0.0
        %517 = vmatpush1.msra.mxu0 0.0
        %518 = vmatprep.subr.mxu0 0.0
        %519 = vmatpush1.msra.mxu0 0.0
        %520 = vmatprep.subr.mxu0 0.0
        %521 = vmatpush1.msra.mxu0 0.0
        %522 = vmatprep.subr.mxu0 0.0
        %523 = vmatpush1.msra.mxu0 0.0
        %524 = vmatprep.subr.mxu0 0.0
        %525 = vmatpush1.msra.mxu0 0.0
        %526 = vmatprep.subr.mxu0 0.0
        %527 = vmatpush1.msra.mxu0 0.0
        %528 = vmatprep.subr.mxu0 0.0
        %529 = vmatpush1.msra.mxu0 0.0
        %530 = vmatprep.subr.mxu0 0.0
        %531 = vmatpush1.msra.mxu0 0.0
        %532 = vmatprep.subr.mxu0 0.0
        %533 = vmatpush1.msra.mxu0 0.0
        %534 = vmatprep.subr.mxu0 0.0
        %535 = vmatpush1.msra.mxu0 0.0
        %536 = vmatprep.subr.mxu0 0.0
        %537 = vmatpush1.msra.mxu0 %v501
        %538 = vmatprep.subr.mxu0 0.0
        %539 = vmatpush1.msra.mxu0 %v500
        %540 = vmatprep.subr.mxu0 0.0
        %541 = vmatpush1.msra.mxu0 %v499
        %542 = vmatprep.subr.mxu0 0.0
        %543 = vmatpush1.msra.mxu0 %v498
        %544 = vmatprep.subr.mxu0 0.0
        %545 = vmatpush2.msra.mxu0 0.0
        %546 = vmatprep.subr.mxu0 0.0
        %547 = vmatpush2.msra.mxu0 0.0
        %548 = vmatprep.subr.mxu0 0.0
        %549 = vmatpush2.msra.mxu0 0.0
        %550 = vmatprep.subr.mxu0 0.0
        %551 = vmatpush2.msra.mxu0 0.0
        %552 = vmatprep.subr.mxu0 0.0
        %553 = vmatpush2.msra.mxu0 0.0
        %554 = vmatprep.subr.mxu0 0.0
        %555 = vmatpush2.msra.mxu0 0.0
        %556 = vmatprep.subr.mxu0 0.0
        %557 = vmatpush2.msra.mxu0 0.0
        %558 = vmatprep.subr.mxu0 0.0
        %559 = vmatpush2.msra.mxu0 0.0
        %560 = vmatprep.subr.mxu0 0.0
        %561 = vmatpush2.msra.mxu0 0.0
        %562 = vmatprep.subr.mxu0 0.0
        %563 = vmatpush2.msra.mxu0 0.0
        %564 = vmatprep.subr.mxu0 0.0
        %565 = vmatpush2.msra.mxu0 0.0
        %566 = vmatprep.subr.mxu0 0.0
        %567 = vmatpush2.msra.mxu0 0.0
        %568 = vmatprep.subr.mxu0 0.0
        %569 = vmatpush2.msra.mxu0 0.0
        %570 = vmatprep.subr.mxu0 0.0
        %571 = vmatpush2.msra.mxu0 0.0
        %572 = vmatprep.subr.mxu0 0.0
        %573 = vmatpush2.msra.mxu0 0.0
        %574 = vmatprep.subr.mxu0 0.0
        %575 = vmatpush2.msra.mxu0 0.0
        %576 = vmatprep.mubr.f32.mxu0 0.0
        %577 = vmatmul.mubr.f32.gmra.mxu0 %v510
        %v578 = vpop.f32.mrf.mxu0
        %v579 = vadd.f32 %v507, %v578
        %v580 = vpop.f32.mrf.mxu0
        %581 = vdwg.mxu0
        %583 = vrot.lane.b32.xlu0 %v579, 96
        %v584 = vpop.permute.xlu0 %583
        %vm585 = vcmask 64512
        %v586 = vsel %vm585, %v579, 0
        %v588 = vsel %vm585, %v584, 0
        %590 = vmatprep.subr.mxu0 0.0
        %591 = vmatpush1.xpose.msra.mxu0 0.0
        %592 = vmatprep.subr.mxu0 0.0
        %593 = vmatpush1.xpose.msra.mxu0 0.0
        %594 = vmatprep.subr.mxu0 0.0
        %595 = vmatpush1.xpose.msra.mxu0 0.0
        %596 = vmatprep.subr.mxu0 0.0
        %597 = vmatpush1.xpose.msra.mxu0 0.0
        %598 = vmatprep.subr.mxu0 0.0
        %599 = vmatpush1.xpose.msra.mxu0 0.0
        %600 = vmatprep.subr.mxu0 0.0
        %601 = vmatpush1.xpose.msra.mxu0 0.0
        %602 = vmatprep.subr.mxu0 0.0
        %603 = vmatpush1.xpose.msra.mxu0 0.0
        %604 = vmatprep.subr.mxu0 0.0
        %605 = vmatpush1.xpose.msra.mxu0 0.0
        %606 = vmatprep.subr.mxu0 0.0
        %607 = vmatpush1.xpose.msra.mxu0 0.0
        %608 = vmatprep.subr.mxu0 0.0
        %609 = vmatpush1.xpose.msra.mxu0 0.0
        %610 = vmatprep.subr.mxu0 0.0
        %611 = vmatpush1.xpose.msra.mxu0 0.0
        %612 = vmatprep.subr.mxu0 0.0
        %613 = vmatpush1.xpose.msra.mxu0 0.0
        %614 = vmatprep.subr.mxu0 0.0
        %615 = vmatpush1.xpose.msra.mxu0 0.0
        %616 = vmatprep.subr.mxu0 0.0
        %617 = vmatpush1.xpose.msra.mxu0 0.0
        %618 = vmatprep.subr.mxu0 0.0
        %619 = vmatpush1.xpose.msra.mxu0 0.0
        %620 = vmatprep.subr.mxu0 0.0
        %621 = vmatpush1.xpose.msra.mxu0 %v588
        %622 = vmatprep.subr.mxu0 0.0
        %623 = vmatpush2.xpose.msra.mxu0 0.0
        %624 = vmatprep.subr.mxu0 0.0
        %625 = vmatpush2.xpose.msra.mxu0 0.0
        %626 = vmatprep.subr.mxu0 0.0
        %627 = vmatpush2.xpose.msra.mxu0 0.0
        %628 = vmatprep.subr.mxu0 0.0
        %629 = vmatpush2.xpose.msra.mxu0 0.0
        %630 = vmatprep.subr.mxu0 0.0
        %631 = vmatpush2.xpose.msra.mxu0 0.0
        %632 = vmatprep.subr.mxu0 0.0
        %633 = vmatpush2.xpose.msra.mxu0 0.0
        %634 = vmatprep.subr.mxu0 0.0
        %635 = vmatpush2.xpose.msra.mxu0 0.0
        %636 = vmatprep.subr.mxu0 0.0
        %637 = vmatpush2.xpose.msra.mxu0 0.0
        %638 = vmatprep.subr.mxu0 0.0
        %639 = vmatpush2.xpose.msra.mxu0 0.0
        %640 = vmatprep.subr.mxu0 0.0
        %641 = vmatpush2.xpose.msra.mxu0 0.0
        %642 = vmatprep.subr.mxu0 0.0
        %643 = vmatpush2.xpose.msra.mxu0 0.0
        %644 = vmatprep.subr.mxu0 0.0
        %645 = vmatpush2.xpose.msra.mxu0 0.0
        %646 = vmatprep.subr.mxu0 0.0
        %647 = vmatpush2.xpose.msra.mxu0 0.0
        %648 = vmatprep.subr.mxu0 0.0
        %649 = vmatpush2.xpose.msra.mxu0 0.0
        %650 = vmatprep.subr.mxu0 0.0
        %651 = vmatpush2.xpose.msra.mxu0 0.0
        %652 = vmatprep.subr.mxu0 0.0
        %653 = vmatpush2.xpose.msra.mxu0 0.0
        %654 = vmatprep.mubr.f32.mxu0 0.0
        %655 = vmatmul.mubr.f32.gmra.mxu0 %v586
        %v656 = vpop.f32.mrf.mxu0
        %v657 = vadd.f32 %v464, %v656
        %v658 = vpop.f32.mrf.mxu0
        %659 = vdwg.mxu0
        %v660 = vsel %vm585, %v657, -inf
        %661 = vmax.xlane.f32.xlu0 %v660
        %v662 = vpop.xlane.xlu0 %661
        %v663 = vsub.f32 %v657, %v662
        %v664 = vmul.f32 %v663, 1.442695
        %v665 = vpow.pop %v664
        %v666 = vsel %vm585, %v665, 0.0
        %667 = vadd.xlane.f32.xlu0 %v666
        %v668 = vpop.xlane.xlu0 %667
        %669 = vrot.lane.b32.xlu0 %v579, 64
        %v670 = vpop.permute.xlu0 %669
        %v673 = vsel %vm585, %v665, 0
        %675 = vmatprep.subr.mxu0 0.0
        %676 = vmatpush1.msra.mxu0 0.0
        %677 = vmatprep.subr.mxu0 0.0
        %678 = vmatpush1.msra.mxu0 0.0
        %679 = vmatprep.subr.mxu0 0.0
        %680 = vmatpush1.msra.mxu0 0.0
        %681 = vmatprep.subr.mxu0 0.0
        %682 = vmatpush1.msra.mxu0 0.0
        %683 = vmatprep.subr.mxu0 0.0
        %684 = vmatpush1.msra.mxu0 0.0
        %685 = vmatprep.subr.mxu0 0.0
        %686 = vmatpush1.msra.mxu0 0.0
        %687 = vmatprep.subr.mxu0 0.0
        %688 = vmatpush1.msra.mxu0 0.0
        %689 = vmatprep.subr.mxu0 0.0
        %690 = vmatpush1.msra.mxu0 0.0
        %691 = vmatprep.subr.mxu0 0.0
        %692 = vmatpush1.msra.mxu0 0.0
        %693 = vmatprep.subr.mxu0 0.0
        %694 = vmatpush1.msra.mxu0 0.0
        %695 = vmatprep.subr.mxu0 0.0
        %696 = vmatpush1.msra.mxu0 0.0
        %697 = vmatprep.subr.mxu0 0.0
        %698 = vmatpush1.msra.mxu0 0.0
        %699 = vmatprep.subr.mxu0 0.0
        %700 = vmatpush1.msra.mxu0 0.0
        %701 = vmatprep.subr.mxu0 0.0
        %702 = vmatpush1.msra.mxu0 0.0
        %703 = vmatprep.subr.mxu0 0.0
        %704 = vmatpush1.msra.mxu0 0.0
        %705 = vmatprep.subr.mxu0 0.0
        %706 = vmatpush1.msra.mxu0 %v670
        %707 = vmatprep.subr.mxu0 0.0
        %708 = vmatpush2.msra.mxu0 0.0
        %709 = vmatprep.subr.mxu0 0.0
        %710 = vmatpush2.msra.mxu0 0.0
        %711 = vmatprep.subr.mxu0 0.0
        %712 = vmatpush2.msra.mxu0 0.0
        %713 = vmatprep.subr.mxu0 0.0
        %714 = vmatpush2.msra.mxu0 0.0
        %715 = vmatprep.subr.mxu0 0.0
        %716 = vmatpush2.msra.mxu0 0.0
        %717 = vmatprep.subr.mxu0 0.0
        %718 = vmatpush2.msra.mxu0 0.0
        %719 = vmatprep.subr.mxu0 0.0
        %720 = vmatpush2.msra.mxu0 0.0
        %721 = vmatprep.subr.mxu0 0.0
        %722 = vmatpush2.msra.mxu0 0.0
        %723 = vmatprep.subr.mxu0 0.0
        %724 = vmatpush2.msra.mxu0 0.0
        %725 = vmatprep.subr.mxu0 0.0
        %726 = vmatpush2.msra.mxu0 0.0
        %727 = vmatprep.subr.mxu0 0.0
        %728 = vmatpush2.msra.mxu0 0.0
        %729 = vmatprep.subr.mxu0 0.0
        %730 = vmatpush2.msra.mxu0 0.0
        %731 = vmatprep.subr.mxu0 0.0
        %732 = vmatpush2.msra.mxu0 0.0
        %733 = vmatprep.subr.mxu0 0.0
        %734 = vmatpush2.msra.mxu0 0.0
        %735 = vmatprep.subr.mxu0 0.0
        %736 = vmatpush2.msra.mxu0 0.0
        %737 = vmatprep.subr.mxu0 0.0
        %738 = vmatpush2.msra.mxu0 0.0
        %739 = vmatprep.mubr.f32.mxu0 0.0
        %740 = vmatmul.mubr.f32.gmra.mxu0 %v673
        %v741 = vpop.f32.mrf.mxu0
        %v742 = vadd.f32 0.0, %v741
        %v743 = vpop.f32.mrf.mxu0
        %744 = vdwg.mxu0
        %v745 = vrcp.pop %v668
        %v746 = vmul.f32 %v742, %v745
        %747 = vrot.lane.b32.xlu0 %v579, 120
        %v748 = vpop.permute.xlu0 %747
        %749 = vrot.lane.b32.xlu0 %v579, 88
        %v750 = vpop.permute.xlu0 %749
        %v751 = vsel %vm585, %v748, 0
        %v753 = vsel %vm585, %v750, 0
        %755 = vmatprep.subr.mxu0 0.0
        %756 = vmatpush1.xpose.msra.mxu0 0.0
        %757 = vmatprep.subr.mxu0 0.0
        %758 = vmatpush1.xpose.msra.mxu0 0.0
        %759 = vmatprep.subr.mxu0 0.0
        %760 = vmatpush1.xpose.msra.mxu0 0.0
        %761 = vmatprep.subr.mxu0 0.0
        %762 = vmatpush1.xpose.msra.mxu0 0.0
        %763 = vmatprep.subr.mxu0 0.0
        %764 = vmatpush1.xpose.msra.mxu0 0.0
        %765 = vmatprep.subr.mxu0 0.0
        %766 = vmatpush1.xpose.msra.mxu0 0.0
        %767 = vmatprep.subr.mxu0 0.0
        %768 = vmatpush1.xpose.msra.mxu0 0.0
        %769 = vmatprep.subr.mxu0 0.0
        %770 = vmatpush1.xpose.msra.mxu0 0.0
        %771 = vmatprep.subr.mxu0 0.0
        %772 = vmatpush1.xpose.msra.mxu0 0.0
        %773 = vmatprep.subr.mxu0 0.0
        %774 = vmatpush1.xpose.msra.mxu0 0.0
        %775 = vmatprep.subr.mxu0 0.0
        %776 = vmatpush1.xpose.msra.mxu0 0.0
        %777 = vmatprep.subr.mxu0 0.0
        %778 = vmatpush1.xpose.msra.mxu0 0.0
        %779 = vmatprep.subr.mxu0 0.0
        %780 = vmatpush1.xpose.msra.mxu0 0.0
        %781 = vmatprep.subr.mxu0 0.0
        %782 = vmatpush1.xpose.msra.mxu0 0.0
        %783 = vmatprep.subr.mxu0 0.0
        %784 = vmatpush1.xpose.msra.mxu0 0.0
        %785 = vmatprep.subr.mxu0 0.0
        %786 = vmatpush1.xpose.msra.mxu0 %v753
        %787 = vmatprep.subr.mxu0 0.0
        %788 = vmatpush2.xpose.msra.mxu0 0.0
        %789 = vmatprep.subr.mxu0 0.0
        %790 = vmatpush2.xpose.msra.mxu0 0.0
        %791 = vmatprep.subr.mxu0 0.0
        %792 = vmatpush2.xpose.msra.mxu0 0.0
        %793 = vmatprep.subr.mxu0 0.0
        %794 = vmatpush2.xpose.msra.mxu0 0.0
        %795 = vmatprep.subr.mxu0 0.0
        %796 = vmatpush2.xpose.msra.mxu0 0.0
        %797 = vmatprep.subr.mxu0 0.0
        %798 = vmatpush2.xpose.msra.mxu0 0.0
        %799 = vmatprep.subr.mxu0 0.0
        %800 = vmatpush2.xpose.msra.mxu0 0.0
        %801 = vmatprep.subr.mxu0 0.0
        %802 = vmatpush2.xpose.msra.mxu0 0.0
        %803 = vmatprep.subr.mxu0 0.0
        %804 = vmatpush2.xpose.msra.mxu0 0.0
        %805 = vmatprep.subr.mxu0 0.0
        %806 = vmatpush2.xpose.msra.mxu0 0.0
        %807 = vmatprep.subr.mxu0 0.0
        %808 = vmatpush2.xpose.msra.mxu0 0.0
        %809 = vmatprep.subr.mxu0 0.0
        %810 = vmatpush2.xpose.msra.mxu0 0.0
        %811 = vmatprep.subr.mxu0 0.0
        %812 = vmatpush2.xpose.msra.mxu0 0.0
        %813 = vmatprep.subr.mxu0 0.0
        %814 = vmatpush2.xpose.msra.mxu0 0.0
        %815 = vmatprep.subr.mxu0 0.0
        %816 = vmatpush2.xpose.msra.mxu0 0.0
        %817 = vmatprep.subr.mxu0 0.0
        %818 = vmatpush2.xpose.msra.mxu0 0.0
        %819 = vmatprep.mubr.f32.mxu0 0.0
        %820 = vmatmul.mubr.f32.gmra.mxu0 %v751
        %v821 = vpop.f32.mrf.mxu0
        %v822 = vadd.f32 %v464, %v821
        %v823 = vpop.f32.mrf.mxu0
        %824 = vdwg.mxu0
        %v825 = vsel %vm585, %v822, -inf
        %826 = vmax.xlane.f32.xlu0 %v825
        %v827 = vpop.xlane.xlu0 %826
        %v828 = vsub.f32 %v822, %v827
        %v829 = vmul.f32 %v828, 1.442695
        %v830 = vpow.pop %v829
        %v831 = vsel %vm585, %v830, 0.0
        %832 = vadd.xlane.f32.xlu0 %v831
        %v833 = vpop.xlane.xlu0 %832
        %834 = vrot.lane.b32.xlu0 %v579, 56
        %v835 = vpop.permute.xlu0 %834
        %v838 = vsel %vm585, %v830, 0
        %840 = vmatprep.subr.mxu0 0.0
        %841 = vmatpush1.msra.mxu0 0.0
        %842 = vmatprep.subr.mxu0 0.0
        %843 = vmatpush1.msra.mxu0 0.0
        %844 = vmatprep.subr.mxu0 0.0
        %845 = vmatpush1.msra.mxu0 0.0
        %846 = vmatprep.subr.mxu0 0.0
        %847 = vmatpush1.msra.mxu0 0.0
        %848 = vmatprep.subr.mxu0 0.0
        %849 = vmatpush1.msra.mxu0 0.0
        %850 = vmatprep.subr.mxu0 0.0
        %851 = vmatpush1.msra.mxu0 0.0
        %852 = vmatprep.subr.mxu0 0.0
        %853 = vmatpush1.msra.mxu0 0.0
        %854 = vmatprep.subr.mxu0 0.0
        %855 = vmatpush1.msra.mxu0 0.0
        %856 = vmatprep.subr.mxu0 0.0
        %857 = vmatpush1.msra.mxu0 0.0
        %858 = vmatprep.subr.mxu0 0.0
        %859 = vmatpush1.msra.mxu0 0.0
        %860 = vmatprep.subr.mxu0 0.0
        %861 = vmatpush1.msra.mxu0 0.0
        %862 = vmatprep.subr.mxu0 0.0
        %863 = vmatpush1.msra.mxu0 0.0
        %864 = vmatprep.subr.mxu0 0.0
        %865 = vmatpush1.msra.mxu0 0.0
        %866 = vmatprep.subr.mxu0 0.0
        %867 = vmatpush1.msra.mxu0 0.0
        %868 = vmatprep.subr.mxu0 0.0
        %869 = vmatpush1.msra.mxu0 0.0
        %870 = vmatprep.subr.mxu0 0.0
        %871 = vmatpush1.msra.mxu0 %v835
        %872 = vmatprep.subr.mxu0 0.0
        %873 = vmatpush2.msra.mxu0 0.0
        %874 = vmatprep.subr.mxu0 0.0
        %875 = vmatpush2.msra.mxu0 0.0
        %876 = vmatprep.subr.mxu0 0.0
        %877 = vmatpush2.msra.mxu0 0.0
        %878 = vmatprep.subr.mxu0 0.0
        %879 = vmatpush2.msra.mxu0 0.0
        %880 = vmatprep.subr.mxu0 0.0
        %881 = vmatpush2.msra.mxu0 0.0
        %882 = vmatprep.subr.mxu0 0.0
        %883 = vmatpush2.msra.mxu0 0.0
        %884 = vmatprep.subr.mxu0 0.0
        %885 = vmatpush2.msra.mxu0 0.0
        %886 = vmatprep.subr.mxu0 0.0
        %887 = vmatpush2.msra.mxu0 0.0
        %888 = vmatprep.subr.mxu0 0.0
        %889 = vmatpush2.msra.mxu0 0.0
        %890 = vmatprep.subr.mxu0 0.0
        %891 = vmatpush2.msra.mxu0 0.0
        %892 = vmatprep.subr.mxu0 0.0
        %893 = vmatpush2.msra.mxu0 0.0
        %894 = vmatprep.subr.mxu0 0.0
        %895 = vmatpush2.msra.mxu0 0.0
        %896 = vmatprep.subr.mxu0 0.0
        %897 = vmatpush2.msra.mxu0 0.0
        %898 = vmatprep.subr.mxu0 0.0
        %899 = vmatpush2.msra.mxu0 0.0
        %900 = vmatprep.subr.mxu0 0.0
        %901 = vmatpush2.msra.mxu0 0.0
        %902 = vmatprep.subr.mxu0 0.0
        %903 = vmatpush2.msra.mxu0 0.0
        %904 = vmatprep.mubr.f32.mxu0 0.0
        %905 = vmatmul.mubr.f32.gmra.mxu0 %v838
        %v906 = vpop.f32.mrf.mxu0
        %v907 = vadd.f32 0.0, %v906
        %v908 = vpop.f32.mrf.mxu0
        %909 = vdwg.mxu0
        %v910 = vrcp.pop %v833
        %v911 = vmul.f32 %v907, %v910
        %912 = vrot.lane.b32.xlu0 %v579, 112
        %v913 = vpop.permute.xlu0 %912
        %914 = vrot.lane.b32.xlu0 %v579, 80
        %v915 = vpop.permute.xlu0 %914
        %v916 = vsel %vm585, %v913, 0
        %v918 = vsel %vm585, %v915, 0
        %920 = vmatprep.subr.mxu0 0.0
        %921 = vmatpush1.xpose.msra.mxu0 0.0
        %922 = vmatprep.subr.mxu0 0.0
        %923 = vmatpush1.xpose.msra.mxu0 0.0
        %924 = vmatprep.subr.mxu0 0.0
        %925 = vmatpush1.xpose.msra.mxu0 0.0
        %926 = vmatprep.subr.mxu0 0.0
        %927 = vmatpush1.xpose.msra.mxu0 0.0
        %928 = vmatprep.subr.mxu0 0.0
        %929 = vmatpush1.xpose.msra.mxu0 0.0
        %930 = vmatprep.subr.mxu0 0.0
        %931 = vmatpush1.xpose.msra.mxu0 0.0
        %932 = vmatprep.subr.mxu0 0.0
        %933 = vmatpush1.xpose.msra.mxu0 0.0
        %934 = vmatprep.subr.mxu0 0.0
        %935 = vmatpush1.xpose.msra.mxu0 0.0
        %936 = vmatprep.subr.mxu0 0.0
        %937 = vmatpush1.xpose.msra.mxu0 0.0
        %938 = vmatprep.subr.mxu0 0.0
        %939 = vmatpush1.xpose.msra.mxu0 0.0
        %940 = vmatprep.subr.mxu0 0.0
        %941 = vmatpush1.xpose.msra.mxu0 0.0
        %942 = vmatprep.subr.mxu0 0.0
        %943 = vmatpush1.xpose.msra.mxu0 0.0
        %944 = vmatprep.subr.mxu0 0.0
        %945 = vmatpush1.xpose.msra.mxu0 0.0
        %946 = vmatprep.subr.mxu0 0.0
        %947 = vmatpush1.xpose.msra.mxu0 0.0
        %948 = vmatprep.subr.mxu0 0.0
        %949 = vmatpush1.xpose.msra.mxu0 0.0
        %950 = vmatprep.subr.mxu0 0.0
        %951 = vmatpush1.xpose.msra.mxu0 %v918
        %952 = vmatprep.subr.mxu0 0.0
        %953 = vmatpush2.xpose.msra.mxu0 0.0
        %954 = vmatprep.subr.mxu0 0.0
        %955 = vmatpush2.xpose.msra.mxu0 0.0
        %956 = vmatprep.subr.mxu0 0.0
        %957 = vmatpush2.xpose.msra.mxu0 0.0
        %958 = vmatprep.subr.mxu0 0.0
        %959 = vmatpush2.xpose.msra.mxu0 0.0
        %960 = vmatprep.subr.mxu0 0.0
        %961 = vmatpush2.xpose.msra.mxu0 0.0
        %962 = vmatprep.subr.mxu0 0.0
        %963 = vmatpush2.xpose.msra.mxu0 0.0
        %964 = vmatprep.subr.mxu0 0.0
        %965 = vmatpush2.xpose.msra.mxu0 0.0
        %966 = vmatprep.subr.mxu0 0.0
        %967 = vmatpush2.xpose.msra.mxu0 0.0
        %968 = vmatprep.subr.mxu0 0.0
        %969 = vmatpush2.xpose.msra.mxu0 0.0
        %970 = vmatprep.subr.mxu0 0.0
        %971 = vmatpush2.xpose.msra.mxu0 0.0
        %972 = vmatprep.subr.mxu0 0.0
        %973 = vmatpush2.xpose.msra.mxu0 0.0
        %974 = vmatprep.subr.mxu0 0.0
        %975 = vmatpush2.xpose.msra.mxu0 0.0
        %976 = vmatprep.subr.mxu0 0.0
        %977 = vmatpush2.xpose.msra.mxu0 0.0
        %978 = vmatprep.subr.mxu0 0.0
        %979 = vmatpush2.xpose.msra.mxu0 0.0
        %980 = vmatprep.subr.mxu0 0.0
        %981 = vmatpush2.xpose.msra.mxu0 0.0
        %982 = vmatprep.subr.mxu0 0.0
        %983 = vmatpush2.xpose.msra.mxu0 0.0
        %984 = vmatprep.mubr.f32.mxu0 0.0
        %985 = vmatmul.mubr.f32.gmra.mxu0 %v916
        %v986 = vpop.f32.mrf.mxu0
        %v987 = vadd.f32 %v464, %v986
        %v988 = vpop.f32.mrf.mxu0
        %989 = vdwg.mxu0
        %v990 = vsel %vm585, %v987, -inf
        %991 = vmax.xlane.f32.xlu0 %v990
        %v992 = vpop.xlane.xlu0 %991
        %v993 = vsub.f32 %v987, %v992
        %v994 = vmul.f32 %v993, 1.442695
        %v995 = vpow.pop %v994
        %v996 = vsel %vm585, %v995, 0.0
        %997 = vadd.xlane.f32.xlu0 %v996
        %v998 = vpop.xlane.xlu0 %997
        %999 = vrot.lane.b32.xlu0 %v579, 48
        %v1000 = vpop.permute.xlu0 %999
        %v1003 = vsel %vm585, %v995, 0
        %1005 = vmatprep.subr.mxu0 0.0
        %1006 = vmatpush1.msra.mxu0 0.0
        %1007 = vmatprep.subr.mxu0 0.0
        %1008 = vmatpush1.msra.mxu0 0.0
        %1009 = vmatprep.subr.mxu0 0.0
        %1010 = vmatpush1.msra.mxu0 0.0
        %1011 = vmatprep.subr.mxu0 0.0
        %1012 = vmatpush1.msra.mxu0 0.0
        %1013 = vmatprep.subr.mxu0 0.0
        %1014 = vmatpush1.msra.mxu0 0.0
        %1015 = vmatprep.subr.mxu0 0.0
        %1016 = vmatpush1.msra.mxu0 0.0
        %1017 = vmatprep.subr.mxu0 0.0
        %1018 = vmatpush1.msra.mxu0 0.0
        %1019 = vmatprep.subr.mxu0 0.0
        %1020 = vmatpush1.msra.mxu0 0.0
        %1021 = vmatprep.subr.mxu0 0.0
        %1022 = vmatpush1.msra.mxu0 0.0
        %1023 = vmatprep.subr.mxu0 0.0
        %1024 = vmatpush1.msra.mxu0 0.0
        %1025 = vmatprep.subr.mxu0 0.0
        %1026 = vmatpush1.msra.mxu0 0.0
        %1027 = vmatprep.subr.mxu0 0.0
        %1028 = vmatpush1.msra.mxu0 0.0
        %1029 = vmatprep.subr.mxu0 0.0
        %1030 = vmatpush1.msra.mxu0 0.0
        %1031 = vmatprep.subr.mxu0 0.0
        %1032 = vmatpush1.msra.mxu0 0.0
        %1033 = vmatprep.subr.mxu0 0.0
        %1034 = vmatpush1.msra.mxu0 0.0
        %1035 = vmatprep.subr.mxu0 0.0
        %1036 = vmatpush1.msra.mxu0 %v1000
        %1037 = vmatprep.subr.mxu0 0.0
        %1038 = vmatpush2.msra.mxu0 0.0
        %1039 = vmatprep.subr.mxu0 0.0
        %1040 = vmatpush2.msra.mxu0 0.0
        %1041 = vmatprep.subr.mxu0 0.0
        %1042 = vmatpush2.msra.mxu0 0.0
        %1043 = vmatprep.subr.mxu0 0.0
        %1044 = vmatpush2.msra.mxu0 0.0
        %1045 = vmatprep.subr.mxu0 0.0
        %1046 = vmatpush2.msra.mxu0 0.0
        %1047 = vmatprep.subr.mxu0 0.0
        %1048 = vmatpush2.msra.mxu0 0.0
        %1049 = vmatprep.subr.mxu0 0.0
        %1050 = vmatpush2.msra.mxu0 0.0
        %1051 = vmatprep.subr.mxu0 0.0
        %1052 = vmatpush2.msra.mxu0 0.0
        %1053 = vmatprep.subr.mxu0 0.0
        %1054 = vmatpush2.msra.mxu0 0.0
        %1055 = vmatprep.subr.mxu0 0.0
        %1056 = vmatpush2.msra.mxu0 0.0
        %1057 = vmatprep.subr.mxu0 0.0
        %1058 = vmatpush2.msra.mxu0 0.0
        %1059 = vmatprep.subr.mxu0 0.0
        %1060 = vmatpush2.msra.mxu0 0.0
        %1061 = vmatprep.subr.mxu0 0.0
        %1062 = vmatpush2.msra.mxu0 0.0
        %1063 = vmatprep.subr.mxu0 0.0
        %1064 = vmatpush2.msra.mxu0 0.0
        %1065 = vmatprep.subr.mxu0 0.0
        %1066 = vmatpush2.msra.mxu0 0.0
        %1067 = vmatprep.subr.mxu0 0.0
        %1068 = vmatpush2.msra.mxu0 0.0
        %1069 = vmatprep.mubr.f32.mxu0 0.0
        %1070 = vmatmul.mubr.f32.gmra.mxu0 %v1003
        %v1071 = vpop.f32.mrf.mxu0
        %v1072 = vadd.f32 0.0, %v1071
        %v1073 = vpop.f32.mrf.mxu0
        %1074 = vdwg.mxu0
        %v1075 = vrcp.pop %v998
        %v1076 = vmul.f32 %v1072, %v1075
        %1077 = vrot.lane.b32.xlu0 %v579, 104
        %v1078 = vpop.permute.xlu0 %1077
        %1079 = vrot.lane.b32.xlu0 %v579, 72
        %v1080 = vpop.permute.xlu0 %1079
        %v1081 = vsel %vm585, %v1078, 0
        %v1083 = vsel %vm585, %v1080, 0
        %1085 = vmatprep.subr.mxu0 0.0
        %1086 = vmatpush1.xpose.msra.mxu0 0.0
        %1087 = vmatprep.subr.mxu0 0.0
        %1088 = vmatpush1.xpose.msra.mxu0 0.0
        %1089 = vmatprep.subr.mxu0 0.0
        %1090 = vmatpush1.xpose.msra.mxu0 0.0
        %1091 = vmatprep.subr.mxu0 0.0
        %1092 = vmatpush1.xpose.msra.mxu0 0.0
        %1093 = vmatprep.subr.mxu0 0.0
        %1094 = vmatpush1.xpose.msra.mxu0 0.0
        %1095 = vmatprep.subr.mxu0 0.0
        %1096 = vmatpush1.xpose.msra.mxu0 0.0
        %1097 = vmatprep.subr.mxu0 0.0
        %1098 = vmatpush1.xpose.msra.mxu0 0.0
        %1099 = vmatprep.subr.mxu0 0.0
        %1100 = vmatpush1.xpose.msra.mxu0 0.0
        %1101 = vmatprep.subr.mxu0 0.0
        %1102 = vmatpush1.xpose.msra.mxu0 0.0
        %1103 = vmatprep.subr.mxu0 0.0
        %1104 = vmatpush1.xpose.msra.mxu0 0.0
        %1105 = vmatprep.subr.mxu0 0.0
        %1106 = vmatpush1.xpose.msra.mxu0 0.0
        %1107 = vmatprep.subr.mxu0 0.0
        %1108 = vmatpush1.xpose.msra.mxu0 0.0
        %1109 = vmatprep.subr.mxu0 0.0
        %1110 = vmatpush1.xpose.msra.mxu0 0.0
        %1111 = vmatprep.subr.mxu0 0.0
        %1112 = vmatpush1.xpose.msra.mxu0 0.0
        %1113 = vmatprep.subr.mxu0 0.0
        %1114 = vmatpush1.xpose.msra.mxu0 0.0
        %1115 = vmatprep.subr.mxu0 0.0
        %1116 = vmatpush1.xpose.msra.mxu0 %v1083
        %1117 = vmatprep.subr.mxu0 0.0
        %1118 = vmatpush2.xpose.msra.mxu0 0.0
        %1119 = vmatprep.subr.mxu0 0.0
        %1120 = vmatpush2.xpose.msra.mxu0 0.0
        %1121 = vmatprep.subr.mxu0 0.0
        %1122 = vmatpush2.xpose.msra.mxu0 0.0
        %1123 = vmatprep.subr.mxu0 0.0
        %1124 = vmatpush2.xpose.msra.mxu0 0.0
        %1125 = vmatprep.subr.mxu0 0.0
        %1126 = vmatpush2.xpose.msra.mxu0 0.0
        %1127 = vmatprep.subr.mxu0 0.0
        %1128 = vmatpush2.xpose.msra.mxu0 0.0
        %1129 = vmatprep.subr.mxu0 0.0
        %1130 = vmatpush2.xpose.msra.mxu0 0.0
        %1131 = vmatprep.subr.mxu0 0.0
        %1132 = vmatpush2.xpose.msra.mxu0 0.0
        %1133 = vmatprep.subr.mxu0 0.0
        %1134 = vmatpush2.xpose.msra.mxu0 0.0
        %1135 = vmatprep.subr.mxu0 0.0
        %1136 = vmatpush2.xpose.msra.mxu0 0.0
        %1137 = vmatprep.subr.mxu0 0.0
        %1138 = vmatpush2.xpose.msra.mxu0 0.0
        %1139 = vmatprep.subr.mxu0 0.0
        %1140 = vmatpush2.xpose.msra.mxu0 0.0
        %1141 = vmatprep.subr.mxu0 0.0
        %1142 = vmatpush2.xpose.msra.mxu0 0.0
        %1143 = vmatprep.subr.mxu0 0.0
        %1144 = vmatpush2.xpose.msra.mxu0 0.0
        %1145 = vmatprep.subr.mxu0 0.0
        %1146 = vmatpush2.xpose.msra.mxu0 0.0
        %1147 = vmatprep.subr.mxu0 0.0
        %1148 = vmatpush2.xpose.msra.mxu0 0.0
        %1149 = vmatprep.mubr.f32.mxu0 0.0
        %1150 = vmatmul.mubr.f32.gmra.mxu0 %v1081
        %v1151 = vpop.f32.mrf.mxu0
        %v1152 = vadd.f32 %v464, %v1151
        %v1153 = vpop.f32.mrf.mxu0
        %1154 = vdwg.mxu0
        %v1155 = vsel %vm585, %v1152, -inf
        %1156 = vmax.xlane.f32.xlu0 %v1155
        %v1157 = vpop.xlane.xlu0 %1156
        %v1158 = vsub.f32 %v1152, %v1157
        %v1159 = vmul.f32 %v1158, 1.442695
        %v1160 = vpow.pop %v1159
        %v1161 = vsel %vm585, %v1160, 0.0
        %1162 = vadd.xlane.f32.xlu0 %v1161
        %v1163 = vpop.xlane.xlu0 %1162
        %1164 = vrot.lane.b32.xlu0 %v579, 40
        %v1165 = vpop.permute.xlu0 %1164
        %v1168 = vsel %vm585, %v1160, 0
        %1170 = vmatprep.subr.mxu0 0.0
        %1171 = vmatpush1.msra.mxu0 0.0
        %1172 = vmatprep.subr.mxu0 0.0
        %1173 = vmatpush1.msra.mxu0 0.0
        %1174 = vmatprep.subr.mxu0 0.0
        %1175 = vmatpush1.msra.mxu0 0.0
        %1176 = vmatprep.subr.mxu0 0.0
        %1177 = vmatpush1.msra.mxu0 0.0
        %1178 = vmatprep.subr.mxu0 0.0
        %1179 = vmatpush1.msra.mxu0 0.0
        %1180 = vmatprep.subr.mxu0 0.0
        %1181 = vmatpush1.msra.mxu0 0.0
        %1182 = vmatprep.subr.mxu0 0.0
        %1183 = vmatpush1.msra.mxu0 0.0
        %1184 = vmatprep.subr.mxu0 0.0
        %1185 = vmatpush1.msra.mxu0 0.0
        %1186 = vmatprep.subr.mxu0 0.0
        %1187 = vmatpush1.msra.mxu0 0.0
        %1188 = vmatprep.subr.mxu0 0.0
        %1189 = vmatpush1.msra.mxu0 0.0
        %1190 = vmatprep.subr.mxu0 0.0
        %1191 = vmatpush1.msra.mxu0 0.0
        %1192 = vmatprep.subr.mxu0 0.0
        %1193 = vmatpush1.msra.mxu0 0.0
        %1194 = vmatprep.subr.mxu0 0.0
        %1195 = vmatpush1.msra.mxu0 0.0
        %1196 = vmatprep.subr.mxu0 0.0
        %1197 = vmatpush1.msra.mxu0 0.0
        %1198 = vmatprep.subr.mxu0 0.0
        %1199 = vmatpush1.msra.mxu0 0.0
        %1200 = vmatprep.subr.mxu0 0.0
        %1201 = vmatpush1.msra.mxu0 %v1165
        %1202 = vmatprep.subr.mxu0 0.0
        %1203 = vmatpush2.msra.mxu0 0.0
        %1204 = vmatprep.subr.mxu0 0.0
        %1205 = vmatpush2.msra.mxu0 0.0
        %1206 = vmatprep.subr.mxu0 0.0
        %1207 = vmatpush2.msra.mxu0 0.0
        %1208 = vmatprep.subr.mxu0 0.0
        %1209 = vmatpush2.msra.mxu0 0.0
        %1210 = vmatprep.subr.mxu0 0.0
        %1211 = vmatpush2.msra.mxu0 0.0
        %1212 = vmatprep.subr.mxu0 0.0
        %1213 = vmatpush2.msra.mxu0 0.0
        %1214 = vmatprep.subr.mxu0 0.0
        %1215 = vmatpush2.msra.mxu0 0.0
        %1216 = vmatprep.subr.mxu0 0.0
        %1217 = vmatpush2.msra.mxu0 0.0
        %1218 = vmatprep.subr.mxu0 0.0
        %1219 = vmatpush2.msra.mxu0 0.0
        %1220 = vmatprep.subr.mxu0 0.0
        %1221 = vmatpush2.msra.mxu0 0.0
        %1222 = vmatprep.subr.mxu0 0.0
        %1223 = vmatpush2.msra.mxu0 0.0
        %1224 = vmatprep.subr.mxu0 0.0
        %1225 = vmatpush2.msra.mxu0 0.0
        %1226 = vmatprep.subr.mxu0 0.0
        %1227 = vmatpush2.msra.mxu0 0.0
        %1228 = vmatprep.subr.mxu0 0.0
        %1229 = vmatpush2.msra.mxu0 0.0
        %1230 = vmatprep.subr.mxu0 0.0
        %1231 = vmatpush2.msra.mxu0 0.0
        %1232 = vmatprep.subr.mxu0 0.0
        %1233 = vmatpush2.msra.mxu0 0.0
        %1234 = vmatprep.mubr.f32.mxu0 0.0
        %1235 = vmatmul.mubr.f32.gmra.mxu0 %v1168
        %v1236 = vpop.f32.mrf.mxu0
        %v1237 = vadd.f32 0.0, %v1236
        %v1238 = vpop.f32.mrf.mxu0
        %1239 = vdwg.mxu0
        %v1240 = vrcp.pop %v1163
        %v1241 = vmul.f32 %v1237, %v1240
        %1243 = vrot.lane.b32.xlu0 %v911, 8
        %v1244 = vpop.permute.xlu0 %1243
        %1247 = vrot.lane.b32.xlu0 %v1076, 16
        %v1248 = vpop.permute.xlu0 %1247
        %1251 = vrot.lane.b32.xlu0 %v1241, 24
        %v1252 = vpop.permute.xlu0 %1251
        %v1254 = vsel %vm585, %v746, %v1244
        %vm1255 = vcmask 130048
        %v1256 = vsel %vm1255, %v1254, %v1248
        %vm1257 = vcmask 195584
        %v1258 = vsel %vm1257, %v1256, %v1252
        %v1259 = vld [vmem:[%s6] sm:$0xff]
        %v1260 = vld [vmem:[%s6 + $0x8] sm:$0xff]
        %v1261 = vld [vmem:[%s6 + $0x10] sm:$0xff]
        %v1262 = vld [vmem:[%s6 + $0x18] sm:$0xff]
        %v1264 = vsel %vm467, %v1258, 0
        %1266 = vmatprep.subr.mxu0 0.0
        %1267 = vmatpush1.msra.mxu0 0.0
        %1268 = vmatprep.subr.mxu0 0.0
        %1269 = vmatpush1.msra.mxu0 0.0
        %1270 = vmatprep.subr.mxu0 0.0
        %1271 = vmatpush1.msra.mxu0 0.0
        %1272 = vmatprep.subr.mxu0 0.0
        %1273 = vmatpush1.msra.mxu0 0.0
        %1274 = vmatprep.subr.mxu0 0.0
        %1275 = vmatpush1.msra.mxu0 0.0
        %1276 = vmatprep.subr.mxu0 0.0
        %1277 = vmatpush1.msra.mxu0 0.0
        %1278 = vmatprep.subr.mxu0 0.0
        %1279 = vmatpush1.msra.mxu0 0.0
        %1280 = vmatprep.subr.mxu0 0.0
        %1281 = vmatpush1.msra.mxu0 0.0
        %1282 = vmatprep.subr.mxu0 0.0
        %1283 = vmatpush1.msra.mxu0 0.0
        %1284 = vmatprep.subr.mxu0 0.0
        %1285 = vmatpush1.msra.mxu0 0.0
        %1286 = vmatprep.subr.mxu0 0.0
        %1287 = vmatpush1.msra.mxu0 0.0
        %1288 = vmatprep.subr.mxu0 0.0
        %1289 = vmatpush1.msra.mxu0 0.0
        %1290 = vmatprep.subr.mxu0 0.0
        %1291 = vmatpush1.msra.mxu0 %v1262
        %1292 = vmatprep.subr.mxu0 0.0
        %1293 = vmatpush1.msra.mxu0 %v1261
        %1294 = vmatprep.subr.mxu0 0.0
        %1295 = vmatpush1.msra.mxu0 %v1260
        %1296 = vmatprep.subr.mxu0 0.0
        %1297 = vmatpush1.msra.mxu0 %v1259
        %1298 = vmatprep.subr.mxu0 0.0
        %1299 = vmatpush2.msra.mxu0 0.0
        %1300 = vmatprep.subr.mxu0 0.0
        %1301 = vmatpush2.msra.mxu0 0.0
        %1302 = vmatprep.subr.mxu0 0.0
        %1303 = vmatpush2.msra.mxu0 0.0
        %1304 = vmatprep.subr.mxu0 0.0
        %1305 = vmatpush2.msra.mxu0 0.0
        %1306 = vmatprep.subr.mxu0 0.0
        %1307 = vmatpush2.msra.mxu0 0.0
        %1308 = vmatprep.subr.mxu0 0.0
        %1309 = vmatpush2.msra.mxu0 0.0
        %1310 = vmatprep.subr.mxu0 0.0
        %1311 = vmatpush2.msra.mxu0 0.0
        %1312 = vmatprep.subr.mxu0 0.0
        %1313 = vmatpush2.msra.mxu0 0.0
        %1314 = vmatprep.subr.mxu0 0.0
        %1315 = vmatpush2.msra.mxu0 0.0
        %1316 = vmatprep.subr.mxu0 0.0
        %1317 = vmatpush2.msra.mxu0 0.0
        %1318 = vmatprep.subr.mxu0 0.0
        %1319 = vmatpush2.msra.mxu0 0.0
        %1320 = vmatprep.subr.mxu0 0.0
        %1321 = vmatpush2.msra.mxu0 0.0
        %1322 = vmatprep.subr.mxu0 0.0
        %1323 = vmatpush2.msra.mxu0 0.0
        %1324 = vmatprep.subr.mxu0 0.0
        %1325 = vmatpush2.msra.mxu0 0.0
        %1326 = vmatprep.subr.mxu0 0.0
        %1327 = vmatpush2.msra.mxu0 0.0
        %1328 = vmatprep.subr.mxu0 0.0
        %1329 = vmatpush2.msra.mxu0 0.0
        %1330 = vmatprep.mubr.f32.mxu0 0.0
        %1331 = vmatmul.mubr.f32.gmra.mxu0 %v1264
        %v1332 = vpop.f32.mrf.mxu0
        %v1333 = vadd.f32 0.0, %v1332
        %v1334 = vpop.f32.mrf.mxu0
        %1335 = vdwg.mxu0
        %v1336 = vadd.f32 %v463, %v1333
        %v1337 = vld [vmem:[%s7] sm:$0x1]
        %v1339 = vlaneseq
        %v1340 = vshrl.u32 %v1339, 7
        %v1341 = vsub.s32 0, %v1340
        %v1342 = vrot.slane %v1337, %v1341
        %v1344 = vadd.f32 %v1336, %v1342
        %v1345 = vld [vmem:[%s8] sm:$0x1]
        %v1346 = vld [vmem:[%s9] sm:$0x1]
        %v1347 = vsel %vm467, %v1344, 0.0
        %1348 = vadd.xlane.f32.xlu0 %v1347
        %v1349 = vpop.xlane.xlu0 %1348
        %v1350 = vmul.f32 %v1349, %v471
        %v1351 = vmul.f32 %v1344, %v1344
        %v1352 = vsel %vm467, %v1351, 0.0
        %1353 = vadd.xlane.f32.xlu0 %v1352
        %v1354 = vpop.xlane.xlu0 %1353
        %v1355 = vmul.f32 %v1354, %v471
        %v1356 = vmul.f32 %v1350, %v1350
        %v1357 = vsub.f32 %v1355, %v1356
        %v1358 = vadd.f32 %v1357, 1e-05
        %v1359 = vsub.f32 %v1344, %v1350
        %v1360 = vrsqrt.pop %v1358
        %v1361 = vmul.f32 %v1359, %v1360
        %v1363 = vlaneseq
        %v1364 = vshrl.u32 %v1363, 7
        %v1365 = vsub.s32 0, %v1364
        %v1366 = vrot.slane %v1345, %v1365
        %v1368 = vmul.f32 %v1366, %v1361
        %v1370 = vlaneseq
        %v1371 = vshrl.u32 %v1370, 7
        %v1372 = vsub.s32 0, %v1371
        %v1373 = vrot.slane %v1346, %v1372
        %v1375 = vadd.f32 %v1368, %v1373
        %v1376 = vld [vmem:[%s10] sm:$0xff]
        %v1377 = vld [vmem:[%s10 + $0x8] sm:$0xff]
        %v1378 = vld [vmem:[%s10 + $0x10] sm:$0xff]
        %v1379 = vld [vmem:[%s10 + $0x18] sm:$0xff]
        %v1380 = vld [vmem:[%s11] sm:$0x1]
        %v1382 = vlaneseq
        %v1383 = vshrl.u32 %v1382, 7
        %v1384 = vsub.s32 0, %v1383
        %v1385 = vrot.slane %v1380, %v1384
        %v1388 = vsel %vm467, %v1375, 0
        %1390 = vmatprep.subr.mxu0 0.0
        %1391 = vmatpush1.msra.mxu0 0.0
        %1392 = vmatprep.subr.mxu0 0.0
        %1393 = vmatpush1.msra.mxu0 0.0
        %1394 = vmatprep.subr.mxu0 0.0
        %1395 = vmatpush1.msra.mxu0 0.0
        %1396 = vmatprep.subr.mxu0 0.0
        %1397 = vmatpush1.msra.mxu0 0.0
        %1398 = vmatprep.subr.mxu0 0.0
        %1399 = vmatpush1.msra.mxu0 0.0
        %1400 = vmatprep.subr.mxu0 0.0
        %1401 = vmatpush1.msra.mxu0 0.0
        %1402 = vmatprep.subr.mxu0 0.0
        %1403 = vmatpush1.msra.mxu0 0.0
        %1404 = vmatprep.subr.mxu0 0.0
        %1405 = vmatpush1.msra.mxu0 0.0
        %1406 = vmatprep.subr.mxu0 0.0
        %1407 = vmatpush1.msra.mxu0 0.0
        %1408 = vmatprep.subr.mxu0 0.0
        %1409 = vmatpush1.msra.mxu0 0.0
        %1410 = vmatprep.subr.mxu0 0.0
        %1411 = vmatpush1.msra.mxu0 0.0
        %1412 = vmatprep.subr.mxu0 0.0
        %1413 = vmatpush1.msra.mxu0 0.0
        %1414 = vmatprep.subr.mxu0 0.0
        %1415 = vmatpush1.msra.mxu0 %v1379
        %1416 = vmatprep.subr.mxu0 0.0
        %1417 = vmatpush1.msra.mxu0 %v1378
        %1418 = vmatprep.subr.mxu0 0.0
        %1419 = vmatpush1.msra.mxu0 %v1377
        %1420 = vmatprep.subr.mxu0 0.0
        %1421 = vmatpush1.msra.mxu0 %v1376
        %1422 = vmatprep.subr.mxu0 0.0
        %1423 = vmatpush2.msra.mxu0 0.0
        %1424 = vmatprep.subr.mxu0 0.0
        %1425 = vmatpush2.msra.mxu0 0.0
        %1426 = vmatprep.subr.mxu0 0.0
        %1427 = vmatpush2.msra.mxu0 0.0
        %1428 = vmatprep.subr.mxu0 0.0
        %1429 = vmatpush2.msra.mxu0 0.0
        %1430 = vmatprep.subr.mxu0 0.0
        %1431 = vmatpush2.msra.mxu0 0.0
        %1432 = vmatprep.subr.mxu0 0.0
        %1433 = vmatpush2.msra.mxu0 0.0
        %1434 = vmatprep.subr.mxu0 0.0
        %1435 = vmatpush2.msra.mxu0 0.0
        %1436 = vmatprep.subr.mxu0 0.0
        %1437 = vmatpush2.msra.mxu0 0.0
        %1438 = vmatprep.subr.mxu0 0.0
        %1439 = vmatpush2.msra.mxu0 0.0
        %1440 = vmatprep.subr.mxu0 0.0
        %1441 = vmatpush2.msra.mxu0 0.0
        %1442 = vmatprep.subr.mxu0 0.0
        %1443 = vmatpush2.msra.mxu0 0.0
        %1444 = vmatprep.subr.mxu0 0.0
        %1445 = vmatpush2.msra.mxu0 0.0
        %1446 = vmatprep.subr.mxu0 0.0
        %1447 = vmatpush2.msra.mxu0 0.0
        %1448 = vmatprep.subr.mxu0 0.0
        %1449 = vmatpush2.msra.mxu0 0.0
        %1450 = vmatprep.subr.mxu0 0.0
        %1451 = vmatpush2.msra.mxu0 0.0
        %1452 = vmatprep.subr.mxu0 0.0
        %1453 = vmatpush2.msra.mxu0 0.0
        %1454 = vmatprep.mubr.f32.mxu0 0.0
        %1455 = vmatmul.mubr.f32.gmra.mxu0 %v1388
        %v1456 = vpop.f32.mrf.mxu0
        %v1457 = vadd.f32 %v1385, %v1456
        %v1458 = vpop.f32.mrf.mxu0
        %1459 = vdwg.mxu0
        %v1460 = vmul.f32 %v1457, 0.5
        %v1461 = vrcp.pop 1.4142135
        %v1462 = vmul.f32 %v1457, %v1461
        %v1463 = verf.f32.pop %v1462
        %v1464 = vadd.f32 %v1463, 1.0
        %v1465 = vmul.f32 %v1460, %v1464
        %v1466 = vld [vmem:[%s12] sm:$0xff]
        %v1467 = vld [vmem:[%s12 + $0x8] sm:$0xff]
        %v1468 = vld [vmem:[%s12 + $0x10] sm:$0xff]
        %v1469 = vld [vmem:[%s12 + $0x18] sm:$0xff]
        %v1470 = vld [vmem:[%s12 + $0x20] sm:$0xff]
        %v1471 = vld [vmem:[%s12 + $0x28] sm:$0xff]
        %v1472 = vld [vmem:[%s12 + $0x30] sm:$0xff]
        %v1473 = vld [vmem:[%s12 + $0x38] sm:$0xff]
        %v1474 = vld [vmem:[%s12 + $0x40] sm:$0xff]
        %v1475 = vld [vmem:[%s12 + $0x48] sm:$0xff]
        %v1476 = vld [vmem:[%s12 + $0x50] sm:$0xff]
        %v1477 = vld [vmem:[%s12 + $0x58] sm:$0xff]
        %v1478 = vld [vmem:[%s12 + $0x60] sm:$0xff]
        %v1479 = vld [vmem:[%s12 + $0x68] sm:$0xff]
        %v1480 = vld [vmem:[%s12 + $0x70] sm:$0xff]
        %v1481 = vld [vmem:[%s12 + $0x78] sm:$0xff]
        %v1482 = vld [vmem:[%s13] sm:$0x1]
        %v1484 = vlaneseq
        %v1485 = vshrl.u32 %v1484, 7
        %v1486 = vsub.s32 0, %v1485
        %v1487 = vrot.slane %v1482, %v1486
        %1489 = vmatprep.subr.mxu0 0.0
        %1490 = vmatpush1.msra.mxu0 %v1481
        %1491 = vmatprep.subr.mxu0 0.0
        %1492 = vmatpush1.msra.mxu0 %v1480
        %1493 = vmatprep.subr.mxu0 0.0
        %1494 = vmatpush1.msra.mxu0 %v1479
        %1495 = vmatprep.subr.mxu0 0.0
        %1496 = vmatpush1.msra.mxu0 %v1478
        %1497 = vmatprep.subr.mxu0 0.0
        %1498 = vmatpush1.msra.mxu0 %v1477
        %1499 = vmatprep.subr.mxu0 0.0
        %1500 = vmatpush1.msra.mxu0 %v1476
        %1501 = vmatprep.subr.mxu0 0.0
        %1502 = vmatpush1.msra.mxu0 %v1475
        %1503 = vmatprep.subr.mxu0 0.0
        %1504 = vmatpush1.msra.mxu0 %v1474
        %1505 = vmatprep.subr.mxu0 0.0
        %1506 = vmatpush1.msra.mxu0 %v1473
        %1507 = vmatprep.subr.mxu0 0.0
        %1508 = vmatpush1.msra.mxu0 %v1472
        %1509 = vmatprep.subr.mxu0 0.0
        %1510 = vmatpush1.msra.mxu0 %v1471
        %1511 = vmatprep.subr.mxu0 0.0
        %1512 = vmatpush1.msra.mxu0 %v1470
        %1513 = vmatprep.subr.mxu0 0.0
        %1514 = vmatpush1.msra.mxu0 %v1469
        %1515 = vmatprep.subr.mxu0 0.0
        %1516 = vmatpush1.msra.mxu0 %v1468
        %1517 = vmatprep.subr.mxu0 0.0
        %1518 = vmatpush1.msra.mxu0 %v1467
        %1519 = vmatprep.subr.mxu0 0.0
        %1520 = vmatpush1.msra.mxu0 %v1466
        %1521 = vmatprep.subr.mxu0 0.0
        %1522 = vmatpush2.msra.mxu0 0.0
        %1523 = vmatprep.subr.mxu0 0.0
        %1524 = vmatpush2.msra.mxu0 0.0
        %1525 = vmatprep.subr.mxu0 0.0
        %1526 = vmatpush2.msra.mxu0 0.0
        %1527 = vmatprep.subr.mxu0 0.0
        %1528 = vmatpush2.msra.mxu0 0.0
        %1529 = vmatprep.subr.mxu0 0.0
        %1530 = vmatpush2.msra.mxu0 0.0
        %1531 = vmatprep.subr.mxu0 0.0
        %1532 = vmatpush2.msra.mxu0 0.0
        %1533 = vmatprep.subr.mxu0 0.0
        %1534 = vmatpush2.msra.mxu0 0.0
        %1535 = vmatprep.subr.mxu0 0.0
        %1536 = vmatpush2.msra.mxu0 0.0
        %1537 = vmatprep.subr.mxu0 0.0
        %1538 = vmatpush2.msra.mxu0 0.0
        %1539 = vmatprep.subr.mxu0 0.0
        %1540 = vmatpush2.msra.mxu0 0.0
        %1541 = vmatprep.subr.mxu0 0.0
        %1542 = vmatpush2.msra.mxu0 0.0
        %1543 = vmatprep.subr.mxu0 0.0
        %1544 = vmatpush2.msra.mxu0 0.0
        %1545 = vmatprep.subr.mxu0 0.0
        %1546 = vmatpush2.msra.mxu0 0.0
        %1547 = vmatprep.subr.mxu0 0.0
        %1548 = vmatpush2.msra.mxu0 0.0
        %1549 = vmatprep.subr.mxu0 0.0
        %1550 = vmatpush2.msra.mxu0 0.0
        %1551 = vmatprep.subr.mxu0 0.0
        %1552 = vmatpush2.msra.mxu0 0.0
        %1553 = vmatprep.mubr.f32.mxu0 0.0
        %1554 = vmatmul.mubr.f32.gmra.mxu0 %v1465
        %v1555 = vpop.f32.mrf.mxu0
        %v1556 = vadd.f32 %v1487, %v1555
        %v1557 = vpop.f32.mrf.mxu0
        %1558 = vdwg.mxu0
        %v1559 = vadd.f32 %v1344, %v1556
        %1560 = vst.msk [vmem:[%s458] sm:$0xff] %vm467, %v1559
        %s1561 = sand.u32 %s335, 1
        %s1562 = scalar_lea.sflag [#allocation3], %s1561
        %s1563 = sand.u32 %s335, 1
        %s1564 = smul.addr %s1563, 8
        %s1565 = scalar_lea.vmem [#allocation2], %s1564
        // Predicated region
        $region77: #{tpu_custom_call.1} parent=75 // pred_check
          %p1566 = pneg %p345
        $region78: #{tpu_custom_call.1} parent=75 // pred_check_branch
          %1568 = sbr.rel (%p1566) target = $region80
        $region79: #{tpu_custom_call.1} parent=75 // pred_region
          %s1570 = ssub.s32 128, 128
          %1571 = vsyncadd %s1562, %s1570
          %s1572 = smul.addr %s28, 128
          %s1573 = scalar_lea.hbm %s14, %s1572
          %s1575 = sshll.u32 %s1565, 4
          %s1576 = int_to_ptr.vmem [resolvable:$true] %s1575
          %1578 = dma.vmem_to_hbm [thread:$0]  %s1576, 128, %s1573, %s1562
        $region80: #{tpu_custom_call.1} parent=75 // pred_fallthru
          _
      $region76: #{tpu_custom_call.1} parent=5 // pred_fallthru
        _
      %p1579 = scmp.le.s32.totalorder 2, %s23
      // Predicated region
      $region81: #{tpu_custom_call.1} parent=5 // pred_check
        %p1580 = pneg %p1579
      $region82: #{tpu_custom_call.1} parent=5 // pred_check_branch
        %1582 = sbr.rel (%p1580) target = $region84
      $region83: #{tpu_custom_call.1} parent=5 // pred_region
        %s1583 = ssub.s32 %s23, 2
        // Predicated region
        $region85: #{tpu_custom_call.1} parent=83 // pred_check
          %p1584 = pneg %p351
        $region86: #{tpu_custom_call.1} parent=83 // pred_check_branch
          %1586 = sbr.rel (%p1584) target = $region88
        $region87: #{tpu_custom_call.1} parent=83 // pred_region
          %s1587 = sand.u32 %s336, 1
          %s1588 = scalar_lea.sflag [#allocation3], %s1587
          %s1589 = sand.u32 %s336, 1
          %s1590 = smul.addr %s1589, 8
          %s1591 = scalar_lea.vmem [#allocation2], %s1590
          %1592 = dma.done %s1588, 128
        $region88: #{tpu_custom_call.1} parent=83 // pred_fallthru
          _
      $region84: #{tpu_custom_call.1} parent=5 // pred_fallthru
        _
    $region6: #{tpu_custom_call.1} parent=1 // loop_footer
      %s27 = sadd.s32 1, %s23
    $region7: #{tpu_custom_call.1} parent=1 // loop_footer_branch
      %22 = sbr.rel target = $region3
    $region8: #{tpu_custom_call.1} parent=1 // loop_exit
      _
    %1593 = vsyncpa [#allocation3], 1
    %s1594 = scalar_lea.sflag [#allocation3], 1
    %1595 = vsyncpa %s1594, 1

</llo_original>
